<compile_context>
chip_gen: v6e
topology: v6e:2x2x1
jax: 0.10.0
libtpu: 0.0.40
codegen_flags: <defaults>
</compile_context>

<pallas_src>
import functools

import numpy as np
import jax
import jax.numpy as jnp
from jax.experimental import pallas as pl
from jax.experimental.pallas import tpu as pltpu

EPS = 1e-5


# --------------------------------------------------------------------------------------
# Kernel
# --------------------------------------------------------------------------------------
def _dense_block_kernel(k_size, n_stages, in_out, x_ref, pvec_ref, w_ref, mask_ref, o_ref):
    """Fused DenseBlock. Layout: activations are (C, N*L); N*L is the lane axis.

    x_ref    : (in_c, N*L)            input activation, channels on sublanes
    pvec_ref : (C_max, 6*n_stages)    packed per-channel vectors; for stage s:
               cols 6s+0..4 = g1, b1, g2*dw_w, dw_w^2, b2 ; col 6s+5 rows[:O] = conv bias
    w_ref    : (n_stages*K*O, C_max)  packed conv weights, row index = (s*K + k)*O + o
    mask_ref : (K, N*L)               1.0 where tap k's source lane stays inside its sequence
    o_ref    : (in_out, N*L)          last-stage output
    """
    nl = x_ref.shape[1]
    inv_n = 1.0 / nl
    pad_l = (k_size - 1) // 2
    pad_r = k_size - 1 - pad_l
    ko = k_size * in_out

    pvec = pvec_ref[...]
    wall = w_ref[...]
    tmask = mask_ref[...]

    def piece_stats(a):
        # Two-pass per-channel (lane-axis) biased batch stats; avoids E[x^2]-m^2 cancellation.
        m = jnp.sum(a, axis=1, keepdims=True) * inv_n
        c = a - m
        v = jnp.sum(c * c, axis=1, keepdims=True) * inv_n
        return m, v

    x = x_ref[...].astype(jnp.float32)
    pieces = [x]                   # dense "concat" kept as separate pieces (never copied)
    stats = [piece_stats(x)]       # BN1 stats cached once per piece, reused across stages
    offsets = [0]                  # channel offset of each piece in the concatenated space

    y = x
    for s in range(n_stages):
        col = 6 * s
        # Per-tap partial products, all taps stacked on sublanes: (K*O, N*L), f32 accum.
        part = jnp.zeros((ko, nl), jnp.float32)
        for p, piece in enumerate(pieces):
            c0 = offsets[p]
            cp = piece.shape[0]
            m1, v1 = stats[p]
            g1 = pvec[c0:c0 + cp, col + 0:col + 1]
            b1 = pvec[c0:c0 + cp, col + 1:col + 2]
            gw2 = pvec[c0:c0 + cp, col + 2:col + 3]     # g2 * dw_w
            dww2 = pvec[c0:c0 + cp, col + 3:col + 4]    # dw_w^2
            b2 = pvec[c0:c0 + cp, col + 4:col + 5]
            # BatchNorm1d #1 (+affine) + ReLU, using cached per-channel stats.
            scale1 = g1 * jax.lax.rsqrt(v1 + EPS)
            yb = jnp.maximum(piece * scale1 + (b1 - scale1 * m1), 0.0)
            # Depthwise Conv1d(k=1, groups=C) folded exactly into BatchNorm1d #2 (+ ReLU):
            #   BN2(w*y + b) = g2*w*(y - mean_y)*rsqrt(w^2*var_y + eps) + b2  (bias cancels)
            m2, v2 = piece_stats(yb)
            scale2 = gw2 * jax.lax.rsqrt(dww2 * v2 + EPS)
            zb = jnp.maximum((yb - m2) * scale2 + b2, 0.0)
            # Conv contribution of this piece: one matmul with ALL K taps stacked on the
            # output rows; the result's lane dim is N*L (lane-dense MXU output).
            w_sp = wall[s * ko:(s + 1) * ko, c0:c0 + cp]            # (K*O, cp)
            part = part + jnp.dot(w_sp, zb, preferred_element_type=jnp.float32)

        # Combine taps: the lane shift commutes with the channel contraction, so it is
        # applied to the small (K*O, N*L) slab, never to the activation. Global edges are
        # zero-padded; interior sequence boundaries are zeroed with the precomputed mask.
        padded = jnp.pad(part, ((0, 0), (pad_l, pad_r)))            # (K*O, N*L + K - 1)
        acc = jnp.zeros((in_out, nl), jnp.float32)
        for k in range(k_size):
            pk = padded[k * in_out:(k + 1) * in_out, k:k + nl]      # shifted tap-k partial
            if k != pad_l:                                          # center tap needs no mask
                pk = pk * tmask[k:k + 1, :]
            acc = acc + pk
        y = acc + pvec[0:in_out, col + 5:col + 6]                   # + conv bias (O, 1)

        if s + 1 < n_stages:
            offsets.append(offsets[-1] + pieces[-1].shape[0])
            pieces.append(y)
            stats.append(piece_stats(y))

    o_ref[...] = y.astype(o_ref.dtype)


# --------------------------------------------------------------------------------------
# Wrapper (one-time layout plumbing) + host-side parameter packing
# --------------------------------------------------------------------------------------
def dense_block_forward(x_ncl, pvec, wall, in_out, k_size, n_stages=4):
    """DenseBlock.forward. x_ncl: (N, C, L) as in PyTorch; returns (N, in_out, L)."""
    N, C, L = x_ncl.shape
    nl = N * L
    pad_l = (k_size - 1) // 2
    # One-time layout plumbing: channels -> sublanes, flattened N*L -> lanes (lane-dense).
    x_cnl = jnp.transpose(x_ncl, (1, 0, 2)).reshape(C, nl)
    # Tap validity masks (1.0 where tap k's source stays inside its own sequence of len L).
    l_pos = jnp.arange(nl, dtype=jnp.int32) % L
    tap_mask = jnp.stack(
        [((l_pos + (k - pad_l) >= 0) & (l_pos + (k - pad_l) < L)).astype(jnp.float32)
         for k in range(k_size)], axis=0)                           # (K, N*L)

    vmem = pl.BlockSpec(memory_space=pltpu.MemorySpace.VMEM)
    out_flat = pl.pallas_call(
        functools.partial(_dense_block_kernel, k_size, n_stages, in_out),
        out_shape=jax.ShapeDtypeStruct((in_out, nl), x_ncl.dtype),
        in_specs=[vmem, vmem, vmem, vmem],
        out_specs=vmem,
        # TODO(synk): grid over N*L (two-pass BN stats/apply, row axis "parallel" for v7x
        # megacore) once realistic sizes no longer fit a single VMEM-resident invocation.
    )(x_cnl, pvec, wall, tap_mask)
    return jnp.transpose(out_flat.reshape(in_out, N, L), (1, 0, 2))


def init_stage_params_torch(key, c_in, c_out, k_size):
    """Deterministic synthetic parameters in PyTorch layout for one stage."""
    ks = jax.random.split(key, 8)
    g1 = 1.0 + 0.1 * jax.random.normal(ks[0], (c_in,), jnp.float32)
    b1 = 0.1 * jax.random.normal(ks[1], (c_in,), jnp.float32)
    dw_w = jax.random.normal(ks[2], (c_in,), jnp.float32)           # Conv1d(k=1, groups=C)
    dw_b = 0.1 * jax.random.normal(ks[3], (c_in,), jnp.float32)
    g2 = 1.0 + 0.1 * jax.random.normal(ks[4], (c_in,), jnp.float32)
    b2 = 0.1 * jax.random.normal(ks[5], (c_in,), jnp.float32)
    scale = 1.0 / jnp.sqrt(jnp.float32(c_in * k_size))
    w = scale * jax.random.normal(ks[6], (c_out, c_in, k_size), jnp.float32)
    wb = scale * jax.random.normal(ks[7], (c_out,), jnp.float32)
    return (g1, b1, dw_w, dw_b, g2, b2, w, wb)


def pack_dense_block_params(raw_params, k_size, in_out, c_max):
    """One-time host packing: fold dw-conv into BN2, pack everything into TWO arrays."""
    n_stages = len(raw_params)
    pvec = np.zeros((c_max, 6 * n_stages), np.float32)
    w_rows = []
    for s, raw in enumerate(raw_params):
        g1, b1, dw_w, _dw_b, g2, b2, w, wb = raw                    # dw bias cancels exactly
        g1, b1, dw_w, g2, b2, w, wb = map(np.asarray, (g1, b1, dw_w, g2, b2, w, wb))
        c_s = g1.shape[0]
        pvec[:c_s, 6 * s + 0] = g1
        pvec[:c_s, 6 * s + 1] = b1
        pvec[:c_s, 6 * s + 2] = g2 * dw_w
        pvec[:c_s, 6 * s + 3] = dw_w * dw_w
        pvec[:c_s, 6 * s + 4] = b2
        pvec[:in_out, 6 * s + 5] = wb
        # (O, C_s, K) -> (K, O, C_s) -> (K*O, C_s): row = k*O + o, matching the kernel.
        wk = np.transpose(w, (2, 0, 1)).reshape(k_size * in_out, c_s)
        w_rows.append(np.pad(wk, ((0, 0), (0, c_max - c_s))))
    wall = np.concatenate(w_rows, axis=0)                           # (n_stages*K*O, C_max)
    return jnp.asarray(pvec), jnp.asarray(wall)


# --------------------------------------------------------------------------------------
# Pure-JAX reference (mirrors the PyTorch ops literally) for in-script verification
# --------------------------------------------------------------------------------------
def _reference_stage(h, raw, k_size):
    g1, b1, dw_w, dw_b, g2, b2, w, wb = raw
    m1 = h.mean(axis=(0, 1))
    v1 = ((h - m1) ** 2).mean(axis=(0, 1))
    h = (h - m1) / jnp.sqrt(v1 + EPS) * g1 + b1
    h = jnp.maximum(h, 0.0)
    h = h * dw_w + dw_b
    m2 = h.mean(axis=(0, 1))
    v2 = ((h - m2) ** 2).mean(axis=(0, 1))
    h = (h - m2) / jnp.sqrt(v2 + EPS) * g2 + b2
    h = jnp.maximum(h, 0.0)
    N, L, _ = h.shape
    pad_l = (k_size - 1) // 2
    pad_r = k_size - 1 - pad_l
    hp = jnp.pad(h, ((0, 0), (pad_l, pad_r), (0, 0)))
    out = jnp.zeros((N, L, w.shape[0]), jnp.float32)
    for k in range(k_size):
        out = out + jnp.einsum('nlc,oc->nlo', hp[:, k:k + L, :], w[:, :, k],
                               precision=jax.lax.Precision.HIGHEST)
    return out + wb


def reference_dense_block(x_ncl, raw_params, k_size):
    feats = jnp.transpose(x_ncl, (0, 2, 1)).astype(jnp.float32)
    y = feats
    for raw in raw_params:
        y = _reference_stage(feats, raw, k_size)
        feats = jnp.concatenate([feats, y], axis=-1)
    return jnp.transpose(y, (0, 2, 1))


# --------------------------------------------------------------------------------------
if __name__ == "__main__":
    # Small shapes consistent with the module: Conv1d input is (N, C, L).
    N, in_c, in_out, L, K = 2, 4, 4, 16, 5
    n_stages = 4

    key = jax.random.PRNGKey(0)
    k_x, k_p = jax.random.split(key)
    x = jax.random.normal(k_x, (N, in_c, L), jnp.float32)           # PyTorch NCL layout

    stage_in_c = [in_c + s * in_out for s in range(n_stages)]
    pkeys = jax.random.split(k_p, n_stages)
    raw_params = [init_stage_params_torch(pkeys[i], stage_in_c[i], in_out, K)
                  for i in range(n_stages)]
    c_max = stage_in_c[-1]
    pvec, wall = pack_dense_block_params(raw_params, K, in_out, c_max)

    out = dense_block_forward(x, pvec, wall, in_out, K, n_stages)
    out = jax.block_until_ready(out)

    assert out.shape == (N, in_out, L), out.shape
    assert bool(jnp.all(jnp.isfinite(out)))

    ref = reference_dense_block(x, raw_params, K)
    max_err = float(jnp.max(jnp.abs(out - ref)))
    assert jnp.allclose(out, ref, rtol=5e-3, atol=5e-3), f"max|err|={max_err}"

    print("KERNEL_OK")
</pallas_src>

<mosaic_0001>
module attributes {stable_mosaic.version = 11 : i64} {
  func.func @_dense_block_kernel(%arg0: memref<4x32xf32, #tpu.memory_space<vmem>>, %arg1: memref<16x24xf32, #tpu.memory_space<vmem>>, %arg2: memref<80x16xf32, #tpu.memory_space<vmem>>, %arg3: memref<5x32xf32, #tpu.memory_space<vmem>>, %arg4: memref<4x32xf32, #tpu.memory_space<vmem>>) attributes {dimension_semantics = [], scalar_prefetch = 0 : i64, scratch_operands = 0 : i64, tpu.core_type = #tpu.core_type<tc>} {
    %c0 = arith.constant 0 : index
    %c0_0 = arith.constant 0 : index
    %0 = vector.load %arg1[%c0, %c0_0] : memref<16x24xf32, #tpu.memory_space<vmem>>, vector<16x24xf32>
    %c0_1 = arith.constant 0 : index
    %c0_2 = arith.constant 0 : index
    %1 = vector.load %arg2[%c0_1, %c0_2] : memref<80x16xf32, #tpu.memory_space<vmem>>, vector<80x16xf32>
    %c0_3 = arith.constant 0 : index
    %c0_4 = arith.constant 0 : index
    %2 = vector.load %arg3[%c0_3, %c0_4] : memref<5x32xf32, #tpu.memory_space<vmem>>, vector<5x32xf32>
    %c0_5 = arith.constant 0 : index
    %c0_6 = arith.constant 0 : index
    %3 = vector.load %arg0[%c0_5, %c0_6] : memref<4x32xf32, #tpu.memory_space<vmem>>, vector<4x32xf32>
    %cst = arith.constant dense<0.000000e+00> : vector<4xf32>
    %4 = vector.multi_reduction <add>, %3, %cst [1] : vector<4x32xf32> to vector<4xf32>
    %5 = vector.shape_cast %4 : vector<4xf32> to vector<4x1xf32>
    %cst_7 = arith.constant 3.125000e-02 : f32
    %6 = vector.broadcast %cst_7 : f32 to vector<4x1xf32>
    %7 = arith.mulf %5, %6 : vector<4x1xf32>
    %8 = vector.broadcast %7 : vector<4x1xf32> to vector<4x32xf32>
    %9 = arith.subf %3, %8 : vector<4x32xf32>
    %10 = arith.mulf %9, %9 : vector<4x32xf32>
    %cst_8 = arith.constant dense<0.000000e+00> : vector<4xf32>
    %11 = vector.multi_reduction <add>, %10, %cst_8 [1] : vector<4x32xf32> to vector<4xf32>
    %12 = vector.shape_cast %11 : vector<4xf32> to vector<4x1xf32>
    %cst_9 = arith.constant 3.125000e-02 : f32
    %13 = vector.broadcast %cst_9 : f32 to vector<4x1xf32>
    %14 = arith.mulf %12, %13 : vector<4x1xf32>
    %cst_10 = arith.constant 0.000000e+00 : f32
    %15 = vector.broadcast %cst_10 : f32 to vector<20x32xf32>
    %16 = vector.extract_strided_slice %0 {offsets = [0, 0], sizes = [4, 1], strides = [1, 1]} : vector<16x24xf32> to vector<4x1xf32>
    %17 = vector.extract_strided_slice %0 {offsets = [0, 1], sizes = [4, 1], strides = [1, 1]} : vector<16x24xf32> to vector<4x1xf32>
    %18 = vector.extract_strided_slice %0 {offsets = [0, 2], sizes = [4, 1], strides = [1, 1]} : vector<16x24xf32> to vector<4x1xf32>
    %19 = vector.extract_strided_slice %0 {offsets = [0, 3], sizes = [4, 1], strides = [1, 1]} : vector<16x24xf32> to vector<4x1xf32>
    %20 = vector.extract_strided_slice %0 {offsets = [0, 4], sizes = [4, 1], strides = [1, 1]} : vector<16x24xf32> to vector<4x1xf32>
    %cst_11 = arith.constant 9.99999974E-6 : f32
    %21 = vector.broadcast %cst_11 : f32 to vector<4x1xf32>
    %22 = arith.addf %14, %21 : vector<4x1xf32>
    %23 = math.rsqrt %22 : vector<4x1xf32>
    %24 = arith.mulf %16, %23 : vector<4x1xf32>
    %25 = vector.broadcast %24 : vector<4x1xf32> to vector<4x32xf32>
    %26 = arith.mulf %3, %25 : vector<4x32xf32>
    %27 = arith.mulf %24, %7 : vector<4x1xf32>
    %28 = arith.subf %17, %27 : vector<4x1xf32>
    %29 = vector.broadcast %28 : vector<4x1xf32> to vector<4x32xf32>
    %30 = arith.addf %26, %29 : vector<4x32xf32>
    %cst_12 = arith.constant 0.000000e+00 : f32
    %31 = vector.broadcast %cst_12 : f32 to vector<4x32xf32>
    %32 = arith.maximumf %30, %31 : vector<4x32xf32>
    %cst_13 = arith.constant dense<0.000000e+00> : vector<4xf32>
    %33 = vector.multi_reduction <add>, %32, %cst_13 [1] : vector<4x32xf32> to vector<4xf32>
    %34 = vector.shape_cast %33 : vector<4xf32> to vector<4x1xf32>
    %cst_14 = arith.constant 3.125000e-02 : f32
    %35 = vector.broadcast %cst_14 : f32 to vector<4x1xf32>
    %36 = arith.mulf %34, %35 : vector<4x1xf32>
    %37 = vector.broadcast %36 : vector<4x1xf32> to vector<4x32xf32>
    %38 = arith.subf %32, %37 : vector<4x32xf32>
    %39 = arith.mulf %38, %38 : vector<4x32xf32>
    %cst_15 = arith.constant dense<0.000000e+00> : vector<4xf32>
    %40 = vector.multi_reduction <add>, %39, %cst_15 [1] : vector<4x32xf32> to vector<4xf32>
    %41 = vector.shape_cast %40 : vector<4xf32> to vector<4x1xf32>
    %cst_16 = arith.constant 3.125000e-02 : f32
    %42 = vector.broadcast %cst_16 : f32 to vector<4x1xf32>
    %43 = arith.mulf %41, %42 : vector<4x1xf32>
    %44 = arith.mulf %19, %43 : vector<4x1xf32>
    %cst_17 = arith.constant 9.99999974E-6 : f32
    %45 = vector.broadcast %cst_17 : f32 to vector<4x1xf32>
    %46 = arith.addf %44, %45 : vector<4x1xf32>
    %47 = math.rsqrt %46 : vector<4x1xf32>
    %48 = arith.mulf %18, %47 : vector<4x1xf32>
    %49 = vector.broadcast %36 : vector<4x1xf32> to vector<4x32xf32>
    %50 = arith.subf %32, %49 : vector<4x32xf32>
    %51 = vector.broadcast %48 : vector<4x1xf32> to vector<4x32xf32>
    %52 = arith.mulf %50, %51 : vector<4x32xf32>
    %53 = vector.broadcast %20 : vector<4x1xf32> to vector<4x32xf32>
    %54 = arith.addf %52, %53 : vector<4x32xf32>
    %cst_18 = arith.constant 0.000000e+00 : f32
    %55 = vector.broadcast %cst_18 : f32 to vector<4x32xf32>
    %56 = arith.maximumf %54, %55 : vector<4x32xf32>
    %57 = vector.extract_strided_slice %1 {offsets = [0, 0], sizes = [20, 4], strides = [1, 1]} : vector<80x16xf32> to vector<20x4xf32>
    %cst_19 = arith.constant dense<0.000000e+00> : vector<20x32xf32>
    %58 = tpu.matmul %57, %56, %cst_19 {dimension_numbers = #tpu.dot_dimension_numbers<[1], [0], [0], [1], [0, 0, 1, 1], [], []>} : vector<20x4xf32>, vector<4x32xf32>, vector<20x32xf32> -> vector<20x32xf32>
    %59 = arith.addf %15, %58 : vector<20x32xf32>
    %c0_i32 = arith.constant 0 : i32
    %60 = arith.sitofp %c0_i32 : i32 to f32
    %61 = vector.broadcast %60 : f32 to vector<20x2xf32>
    %62 = tpu.concatenate %61, %59 in 1 : vector<20x2xf32>, vector<20x32xf32> -> vector<20x34xf32>
    %63 = vector.broadcast %60 : f32 to vector<20x2xf32>
    %64 = tpu.concatenate %62, %63 in 1 : vector<20x34xf32>, vector<20x2xf32> -> vector<20x36xf32>
    %cst_20 = arith.constant 0.000000e+00 : f32
    %65 = vector.broadcast %cst_20 : f32 to vector<4x32xf32>
    %66 = vector.extract_strided_slice %64 {offsets = [0, 0], sizes = [4, 32], strides = [1, 1]} : vector<20x36xf32> to vector<4x32xf32>
    %67 = vector.extract_strided_slice %2 {offsets = [0, 0], sizes = [1, 32], strides = [1, 1]} : vector<5x32xf32> to vector<1x32xf32>
    %68 = vector.broadcast %67 : vector<1x32xf32> to vector<4x32xf32>
    %69 = arith.mulf %66, %68 : vector<4x32xf32>
    %70 = arith.addf %65, %69 : vector<4x32xf32>
    %71 = vector.extract_strided_slice %64 {offsets = [4, 1], sizes = [4, 32], strides = [1, 1]} : vector<20x36xf32> to vector<4x32xf32>
    %72 = vector.extract_strided_slice %2 {offsets = [1, 0], sizes = [1, 32], strides = [1, 1]} : vector<5x32xf32> to vector<1x32xf32>
    %73 = vector.broadcast %72 : vector<1x32xf32> to vector<4x32xf32>
    %74 = arith.mulf %71, %73 : vector<4x32xf32>
    %75 = arith.addf %70, %74 : vector<4x32xf32>
    %76 = vector.extract_strided_slice %64 {offsets = [8, 2], sizes = [4, 32], strides = [1, 1]} : vector<20x36xf32> to vector<4x32xf32>
    %77 = arith.addf %75, %76 : vector<4x32xf32>
    %78 = vector.extract_strided_slice %64 {offsets = [12, 3], sizes = [4, 32], strides = [1, 1]} : vector<20x36xf32> to vector<4x32xf32>
    %79 = vector.extract_strided_slice %2 {offsets = [3, 0], sizes = [1, 32], strides = [1, 1]} : vector<5x32xf32> to vector<1x32xf32>
    %80 = vector.broadcast %79 : vector<1x32xf32> to vector<4x32xf32>
    %81 = arith.mulf %78, %80 : vector<4x32xf32>
    %82 = arith.addf %77, %81 : vector<4x32xf32>
    %83 = vector.extract_strided_slice %64 {offsets = [16, 4], sizes = [4, 32], strides = [1, 1]} : vector<20x36xf32> to vector<4x32xf32>
    %84 = vector.extract_strided_slice %2 {offsets = [4, 0], sizes = [1, 32], strides = [1, 1]} : vector<5x32xf32> to vector<1x32xf32>
    %85 = vector.broadcast %84 : vector<1x32xf32> to vector<4x32xf32>
    %86 = arith.mulf %83, %85 : vector<4x32xf32>
    %87 = arith.addf %82, %86 : vector<4x32xf32>
    %88 = vector.extract_strided_slice %0 {offsets = [0, 5], sizes = [4, 1], strides = [1, 1]} : vector<16x24xf32> to vector<4x1xf32>
    %89 = vector.broadcast %88 : vector<4x1xf32> to vector<4x32xf32>
    %90 = arith.addf %87, %89 : vector<4x32xf32>
    %cst_21 = arith.constant dense<0.000000e+00> : vector<4xf32>
    %91 = vector.multi_reduction <add>, %90, %cst_21 [1] : vector<4x32xf32> to vector<4xf32>
    %92 = vector.shape_cast %91 : vector<4xf32> to vector<4x1xf32>
    %cst_22 = arith.constant 3.125000e-02 : f32
    %93 = vector.broadcast %cst_22 : f32 to vector<4x1xf32>
    %94 = arith.mulf %92, %93 : vector<4x1xf32>
    %95 = vector.broadcast %94 : vector<4x1xf32> to vector<4x32xf32>
    %96 = arith.subf %90, %95 : vector<4x32xf32>
    %97 = arith.mulf %96, %96 : vector<4x32xf32>
    %cst_23 = arith.constant dense<0.000000e+00> : vector<4xf32>
    %98 = vector.multi_reduction <add>, %97, %cst_23 [1] : vector<4x32xf32> to vector<4xf32>
    %99 = vector.shape_cast %98 : vector<4xf32> to vector<4x1xf32>
    %cst_24 = arith.constant 3.125000e-02 : f32
    %100 = vector.broadcast %cst_24 : f32 to vector<4x1xf32>
    %101 = arith.mulf %99, %100 : vector<4x1xf32>
    %cst_25 = arith.constant 0.000000e+00 : f32
    %102 = vector.broadcast %cst_25 : f32 to vector<20x32xf32>
    %103 = vector.extract_strided_slice %0 {offsets = [0, 6], sizes = [4, 1], strides = [1, 1]} : vector<16x24xf32> to vector<4x1xf32>
    %104 = vector.extract_strided_slice %0 {offsets = [0, 7], sizes = [4, 1], strides = [1, 1]} : vector<16x24xf32> to vector<4x1xf32>
    %105 = vector.extract_strided_slice %0 {offsets = [0, 8], sizes = [4, 1], strides = [1, 1]} : vector<16x24xf32> to vector<4x1xf32>
    %106 = vector.extract_strided_slice %0 {offsets = [0, 9], sizes = [4, 1], strides = [1, 1]} : vector<16x24xf32> to vector<4x1xf32>
    %107 = vector.extract_strided_slice %0 {offsets = [0, 10], sizes = [4, 1], strides = [1, 1]} : vector<16x24xf32> to vector<4x1xf32>
    %cst_26 = arith.constant 9.99999974E-6 : f32
    %108 = vector.broadcast %cst_26 : f32 to vector<4x1xf32>
    %109 = arith.addf %14, %108 : vector<4x1xf32>
    %110 = math.rsqrt %109 : vector<4x1xf32>
    %111 = arith.mulf %103, %110 : vector<4x1xf32>
    %112 = vector.broadcast %111 : vector<4x1xf32> to vector<4x32xf32>
    %113 = arith.mulf %3, %112 : vector<4x32xf32>
    %114 = arith.mulf %111, %7 : vector<4x1xf32>
    %115 = arith.subf %104, %114 : vector<4x1xf32>
    %116 = vector.broadcast %115 : vector<4x1xf32> to vector<4x32xf32>
    %117 = arith.addf %113, %116 : vector<4x32xf32>
    %cst_27 = arith.constant 0.000000e+00 : f32
    %118 = vector.broadcast %cst_27 : f32 to vector<4x32xf32>
    %119 = arith.maximumf %117, %118 : vector<4x32xf32>
    %cst_28 = arith.constant dense<0.000000e+00> : vector<4xf32>
    %120 = vector.multi_reduction <add>, %119, %cst_28 [1] : vector<4x32xf32> to vector<4xf32>
    %121 = vector.shape_cast %120 : vector<4xf32> to vector<4x1xf32>
    %cst_29 = arith.constant 3.125000e-02 : f32
    %122 = vector.broadcast %cst_29 : f32 to vector<4x1xf32>
    %123 = arith.mulf %121, %122 : vector<4x1xf32>
    %124 = vector.broadcast %123 : vector<4x1xf32> to vector<4x32xf32>
    %125 = arith.subf %119, %124 : vector<4x32xf32>
    %126 = arith.mulf %125, %125 : vector<4x32xf32>
    %cst_30 = arith.constant dense<0.000000e+00> : vector<4xf32>
    %127 = vector.multi_reduction <add>, %126, %cst_30 [1] : vector<4x32xf32> to vector<4xf32>
    %128 = vector.shape_cast %127 : vector<4xf32> to vector<4x1xf32>
    %cst_31 = arith.constant 3.125000e-02 : f32
    %129 = vector.broadcast %cst_31 : f32 to vector<4x1xf32>
    %130 = arith.mulf %128, %129 : vector<4x1xf32>
    %131 = arith.mulf %106, %130 : vector<4x1xf32>
    %cst_32 = arith.constant 9.99999974E-6 : f32
    %132 = vector.broadcast %cst_32 : f32 to vector<4x1xf32>
    %133 = arith.addf %131, %132 : vector<4x1xf32>
    %134 = math.rsqrt %133 : vector<4x1xf32>
    %135 = arith.mulf %105, %134 : vector<4x1xf32>
    %136 = vector.broadcast %123 : vector<4x1xf32> to vector<4x32xf32>
    %137 = arith.subf %119, %136 : vector<4x32xf32>
    %138 = vector.broadcast %135 : vector<4x1xf32> to vector<4x32xf32>
    %139 = arith.mulf %137, %138 : vector<4x32xf32>
    %140 = vector.broadcast %107 : vector<4x1xf32> to vector<4x32xf32>
    %141 = arith.addf %139, %140 : vector<4x32xf32>
    %cst_33 = arith.constant 0.000000e+00 : f32
    %142 = vector.broadcast %cst_33 : f32 to vector<4x32xf32>
    %143 = arith.maximumf %141, %142 : vector<4x32xf32>
    %144 = vector.extract_strided_slice %1 {offsets = [20, 0], sizes = [20, 4], strides = [1, 1]} : vector<80x16xf32> to vector<20x4xf32>
    %cst_34 = arith.constant dense<0.000000e+00> : vector<20x32xf32>
    %145 = tpu.matmul %144, %143, %cst_34 {dimension_numbers = #tpu.dot_dimension_numbers<[1], [0], [0], [1], [0, 0, 1, 1], [], []>} : vector<20x4xf32>, vector<4x32xf32>, vector<20x32xf32> -> vector<20x32xf32>
    %146 = arith.addf %102, %145 : vector<20x32xf32>
    %147 = vector.extract_strided_slice %0 {offsets = [4, 6], sizes = [4, 1], strides = [1, 1]} : vector<16x24xf32> to vector<4x1xf32>
    %148 = vector.extract_strided_slice %0 {offsets = [4, 7], sizes = [4, 1], strides = [1, 1]} : vector<16x24xf32> to vector<4x1xf32>
    %149 = vector.extract_strided_slice %0 {offsets = [4, 8], sizes = [4, 1], strides = [1, 1]} : vector<16x24xf32> to vector<4x1xf32>
    %150 = vector.extract_strided_slice %0 {offsets = [4, 9], sizes = [4, 1], strides = [1, 1]} : vector<16x24xf32> to vector<4x1xf32>
    %151 = vector.extract_strided_slice %0 {offsets = [4, 10], sizes = [4, 1], strides = [1, 1]} : vector<16x24xf32> to vector<4x1xf32>
    %cst_35 = arith.constant 9.99999974E-6 : f32
    %152 = vector.broadcast %cst_35 : f32 to vector<4x1xf32>
    %153 = arith.addf %101, %152 : vector<4x1xf32>
    %154 = math.rsqrt %153 : vector<4x1xf32>
    %155 = arith.mulf %147, %154 : vector<4x1xf32>
    %156 = vector.broadcast %155 : vector<4x1xf32> to vector<4x32xf32>
    %157 = arith.mulf %90, %156 : vector<4x32xf32>
    %158 = arith.mulf %155, %94 : vector<4x1xf32>
    %159 = arith.subf %148, %158 : vector<4x1xf32>
    %160 = vector.broadcast %159 : vector<4x1xf32> to vector<4x32xf32>
    %161 = arith.addf %157, %160 : vector<4x32xf32>
    %cst_36 = arith.constant 0.000000e+00 : f32
    %162 = vector.broadcast %cst_36 : f32 to vector<4x32xf32>
    %163 = arith.maximumf %161, %162 : vector<4x32xf32>
    %cst_37 = arith.constant dense<0.000000e+00> : vector<4xf32>
    %164 = vector.multi_reduction <add>, %163, %cst_37 [1] : vector<4x32xf32> to vector<4xf32>
    %165 = vector.shape_cast %164 : vector<4xf32> to vector<4x1xf32>
    %cst_38 = arith.constant 3.125000e-02 : f32
    %166 = vector.broadcast %cst_38 : f32 to vector<4x1xf32>
    %167 = arith.mulf %165, %166 : vector<4x1xf32>
    %168 = vector.broadcast %167 : vector<4x1xf32> to vector<4x32xf32>
    %169 = arith.subf %163, %168 : vector<4x32xf32>
    %170 = arith.mulf %169, %169 : vector<4x32xf32>
    %cst_39 = arith.constant dense<0.000000e+00> : vector<4xf32>
    %171 = vector.multi_reduction <add>, %170, %cst_39 [1] : vector<4x32xf32> to vector<4xf32>
    %172 = vector.shape_cast %171 : vector<4xf32> to vector<4x1xf32>
    %cst_40 = arith.constant 3.125000e-02 : f32
    %173 = vector.broadcast %cst_40 : f32 to vector<4x1xf32>
    %174 = arith.mulf %172, %173 : vector<4x1xf32>
    %175 = arith.mulf %150, %174 : vector<4x1xf32>
    %cst_41 = arith.constant 9.99999974E-6 : f32
    %176 = vector.broadcast %cst_41 : f32 to vector<4x1xf32>
    %177 = arith.addf %175, %176 : vector<4x1xf32>
    %178 = math.rsqrt %177 : vector<4x1xf32>
    %179 = arith.mulf %149, %178 : vector<4x1xf32>
    %180 = vector.broadcast %167 : vector<4x1xf32> to vector<4x32xf32>
    %181 = arith.subf %163, %180 : vector<4x32xf32>
    %182 = vector.broadcast %179 : vector<4x1xf32> to vector<4x32xf32>
    %183 = arith.mulf %181, %182 : vector<4x32xf32>
    %184 = vector.broadcast %151 : vector<4x1xf32> to vector<4x32xf32>
    %185 = arith.addf %183, %184 : vector<4x32xf32>
    %cst_42 = arith.constant 0.000000e+00 : f32
    %186 = vector.broadcast %cst_42 : f32 to vector<4x32xf32>
    %187 = arith.maximumf %185, %186 : vector<4x32xf32>
    %188 = vector.extract_strided_slice %1 {offsets = [20, 4], sizes = [20, 4], strides = [1, 1]} : vector<80x16xf32> to vector<20x4xf32>
    %cst_43 = arith.constant dense<0.000000e+00> : vector<20x32xf32>
    %189 = tpu.matmul %188, %187, %cst_43 {dimension_numbers = #tpu.dot_dimension_numbers<[1], [0], [0], [1], [0, 0, 1, 1], [], []>} : vector<20x4xf32>, vector<4x32xf32>, vector<20x32xf32> -> vector<20x32xf32>
    %190 = arith.addf %146, %189 : vector<20x32xf32>
    %c0_i32_44 = arith.constant 0 : i32
    %191 = arith.sitofp %c0_i32_44 : i32 to f32
    %192 = vector.broadcast %191 : f32 to vector<20x2xf32>
    %193 = tpu.concatenate %192, %190 in 1 : vector<20x2xf32>, vector<20x32xf32> -> vector<20x34xf32>
    %194 = vector.broadcast %191 : f32 to vector<20x2xf32>
    %195 = tpu.concatenate %193, %194 in 1 : vector<20x34xf32>, vector<20x2xf32> -> vector<20x36xf32>
    %cst_45 = arith.constant 0.000000e+00 : f32
    %196 = vector.broadcast %cst_45 : f32 to vector<4x32xf32>
    %197 = vector.extract_strided_slice %195 {offsets = [0, 0], sizes = [4, 32], strides = [1, 1]} : vector<20x36xf32> to vector<4x32xf32>
    %198 = vector.extract_strided_slice %2 {offsets = [0, 0], sizes = [1, 32], strides = [1, 1]} : vector<5x32xf32> to vector<1x32xf32>
    %199 = vector.broadcast %198 : vector<1x32xf32> to vector<4x32xf32>
    %200 = arith.mulf %197, %199 : vector<4x32xf32>
    %201 = arith.addf %196, %200 : vector<4x32xf32>
    %202 = vector.extract_strided_slice %195 {offsets = [4, 1], sizes = [4, 32], strides = [1, 1]} : vector<20x36xf32> to vector<4x32xf32>
    %203 = vector.extract_strided_slice %2 {offsets = [1, 0], sizes = [1, 32], strides = [1, 1]} : vector<5x32xf32> to vector<1x32xf32>
    %204 = vector.broadcast %203 : vector<1x32xf32> to vector<4x32xf32>
    %205 = arith.mulf %202, %204 : vector<4x32xf32>
    %206 = arith.addf %201, %205 : vector<4x32xf32>
    %207 = vector.extract_strided_slice %195 {offsets = [8, 2], sizes = [4, 32], strides = [1, 1]} : vector<20x36xf32> to vector<4x32xf32>
    %208 = arith.addf %206, %207 : vector<4x32xf32>
    %209 = vector.extract_strided_slice %195 {offsets = [12, 3], sizes = [4, 32], strides = [1, 1]} : vector<20x36xf32> to vector<4x32xf32>
    %210 = vector.extract_strided_slice %2 {offsets = [3, 0], sizes = [1, 32], strides = [1, 1]} : vector<5x32xf32> to vector<1x32xf32>
    %211 = vector.broadcast %210 : vector<1x32xf32> to vector<4x32xf32>
    %212 = arith.mulf %209, %211 : vector<4x32xf32>
    %213 = arith.addf %208, %212 : vector<4x32xf32>
    %214 = vector.extract_strided_slice %195 {offsets = [16, 4], sizes = [4, 32], strides = [1, 1]} : vector<20x36xf32> to vector<4x32xf32>
    %215 = vector.extract_strided_slice %2 {offsets = [4, 0], sizes = [1, 32], strides = [1, 1]} : vector<5x32xf32> to vector<1x32xf32>
    %216 = vector.broadcast %215 : vector<1x32xf32> to vector<4x32xf32>
    %217 = arith.mulf %214, %216 : vector<4x32xf32>
    %218 = arith.addf %213, %217 : vector<4x32xf32>
    %219 = vector.extract_strided_slice %0 {offsets = [0, 11], sizes = [4, 1], strides = [1, 1]} : vector<16x24xf32> to vector<4x1xf32>
    %220 = vector.broadcast %219 : vector<4x1xf32> to vector<4x32xf32>
    %221 = arith.addf %218, %220 : vector<4x32xf32>
    %cst_46 = arith.constant dense<0.000000e+00> : vector<4xf32>
    %222 = vector.multi_reduction <add>, %221, %cst_46 [1] : vector<4x32xf32> to vector<4xf32>
    %223 = vector.shape_cast %222 : vector<4xf32> to vector<4x1xf32>
    %cst_47 = arith.constant 3.125000e-02 : f32
    %224 = vector.broadcast %cst_47 : f32 to vector<4x1xf32>
    %225 = arith.mulf %223, %224 : vector<4x1xf32>
    %226 = vector.broadcast %225 : vector<4x1xf32> to vector<4x32xf32>
    %227 = arith.subf %221, %226 : vector<4x32xf32>
    %228 = arith.mulf %227, %227 : vector<4x32xf32>
    %cst_48 = arith.constant dense<0.000000e+00> : vector<4xf32>
    %229 = vector.multi_reduction <add>, %228, %cst_48 [1] : vector<4x32xf32> to vector<4xf32>
    %230 = vector.shape_cast %229 : vector<4xf32> to vector<4x1xf32>
    %cst_49 = arith.constant 3.125000e-02 : f32
    %231 = vector.broadcast %cst_49 : f32 to vector<4x1xf32>
    %232 = arith.mulf %230, %231 : vector<4x1xf32>
    %cst_50 = arith.constant 0.000000e+00 : f32
    %233 = vector.broadcast %cst_50 : f32 to vector<20x32xf32>
    %234 = vector.extract_strided_slice %0 {offsets = [0, 12], sizes = [4, 1], strides = [1, 1]} : vector<16x24xf32> to vector<4x1xf32>
    %235 = vector.extract_strided_slice %0 {offsets = [0, 13], sizes = [4, 1], strides = [1, 1]} : vector<16x24xf32> to vector<4x1xf32>
    %236 = vector.extract_strided_slice %0 {offsets = [0, 14], sizes = [4, 1], strides = [1, 1]} : vector<16x24xf32> to vector<4x1xf32>
    %237 = vector.extract_strided_slice %0 {offsets = [0, 15], sizes = [4, 1], strides = [1, 1]} : vector<16x24xf32> to vector<4x1xf32>
    %238 = vector.extract_strided_slice %0 {offsets = [0, 16], sizes = [4, 1], strides = [1, 1]} : vector<16x24xf32> to vector<4x1xf32>
    %cst_51 = arith.constant 9.99999974E-6 : f32
    %239 = vector.broadcast %cst_51 : f32 to vector<4x1xf32>
    %240 = arith.addf %14, %239 : vector<4x1xf32>
    %241 = math.rsqrt %240 : vector<4x1xf32>
    %242 = arith.mulf %234, %241 : vector<4x1xf32>
    %243 = vector.broadcast %242 : vector<4x1xf32> to vector<4x32xf32>
    %244 = arith.mulf %3, %243 : vector<4x32xf32>
    %245 = arith.mulf %242, %7 : vector<4x1xf32>
    %246 = arith.subf %235, %245 : vector<4x1xf32>
    %247 = vector.broadcast %246 : vector<4x1xf32> to vector<4x32xf32>
    %248 = arith.addf %244, %247 : vector<4x32xf32>
    %cst_52 = arith.constant 0.000000e+00 : f32
    %249 = vector.broadcast %cst_52 : f32 to vector<4x32xf32>
    %250 = arith.maximumf %248, %249 : vector<4x32xf32>
    %cst_53 = arith.constant dense<0.000000e+00> : vector<4xf32>
    %251 = vector.multi_reduction <add>, %250, %cst_53 [1] : vector<4x32xf32> to vector<4xf32>
    %252 = vector.shape_cast %251 : vector<4xf32> to vector<4x1xf32>
    %cst_54 = arith.constant 3.125000e-02 : f32
    %253 = vector.broadcast %cst_54 : f32 to vector<4x1xf32>
    %254 = arith.mulf %252, %253 : vector<4x1xf32>
    %255 = vector.broadcast %254 : vector<4x1xf32> to vector<4x32xf32>
    %256 = arith.subf %250, %255 : vector<4x32xf32>
    %257 = arith.mulf %256, %256 : vector<4x32xf32>
    %cst_55 = arith.constant dense<0.000000e+00> : vector<4xf32>
    %258 = vector.multi_reduction <add>, %257, %cst_55 [1] : vector<4x32xf32> to vector<4xf32>
    %259 = vector.shape_cast %258 : vector<4xf32> to vector<4x1xf32>
    %cst_56 = arith.constant 3.125000e-02 : f32
    %260 = vector.broadcast %cst_56 : f32 to vector<4x1xf32>
    %261 = arith.mulf %259, %260 : vector<4x1xf32>
    %262 = arith.mulf %237, %261 : vector<4x1xf32>
    %cst_57 = arith.constant 9.99999974E-6 : f32
    %263 = vector.broadcast %cst_57 : f32 to vector<4x1xf32>
    %264 = arith.addf %262, %263 : vector<4x1xf32>
    %265 = math.rsqrt %264 : vector<4x1xf32>
    %266 = arith.mulf %236, %265 : vector<4x1xf32>
    %267 = vector.broadcast %254 : vector<4x1xf32> to vector<4x32xf32>
    %268 = arith.subf %250, %267 : vector<4x32xf32>
    %269 = vector.broadcast %266 : vector<4x1xf32> to vector<4x32xf32>
    %270 = arith.mulf %268, %269 : vector<4x32xf32>
    %271 = vector.broadcast %238 : vector<4x1xf32> to vector<4x32xf32>
    %272 = arith.addf %270, %271 : vector<4x32xf32>
    %cst_58 = arith.constant 0.000000e+00 : f32
    %273 = vector.broadcast %cst_58 : f32 to vector<4x32xf32>
    %274 = arith.maximumf %272, %273 : vector<4x32xf32>
    %275 = vector.extract_strided_slice %1 {offsets = [40, 0], sizes = [20, 4], strides = [1, 1]} : vector<80x16xf32> to vector<20x4xf32>
    %cst_59 = arith.constant dense<0.000000e+00> : vector<20x32xf32>
    %276 = tpu.matmul %275, %274, %cst_59 {dimension_numbers = #tpu.dot_dimension_numbers<[1], [0], [0], [1], [0, 0, 1, 1], [], []>} : vector<20x4xf32>, vector<4x32xf32>, vector<20x32xf32> -> vector<20x32xf32>
    %277 = arith.addf %233, %276 : vector<20x32xf32>
    %278 = vector.extract_strided_slice %0 {offsets = [4, 12], sizes = [4, 1], strides = [1, 1]} : vector<16x24xf32> to vector<4x1xf32>
    %279 = vector.extract_strided_slice %0 {offsets = [4, 13], sizes = [4, 1], strides = [1, 1]} : vector<16x24xf32> to vector<4x1xf32>
    %280 = vector.extract_strided_slice %0 {offsets = [4, 14], sizes = [4, 1], strides = [1, 1]} : vector<16x24xf32> to vector<4x1xf32>
    %281 = vector.extract_strided_slice %0 {offsets = [4, 15], sizes = [4, 1], strides = [1, 1]} : vector<16x24xf32> to vector<4x1xf32>
    %282 = vector.extract_strided_slice %0 {offsets = [4, 16], sizes = [4, 1], strides = [1, 1]} : vector<16x24xf32> to vector<4x1xf32>
    %cst_60 = arith.constant 9.99999974E-6 : f32
    %283 = vector.broadcast %cst_60 : f32 to vector<4x1xf32>
    %284 = arith.addf %101, %283 : vector<4x1xf32>
    %285 = math.rsqrt %284 : vector<4x1xf32>
    %286 = arith.mulf %278, %285 : vector<4x1xf32>
    %287 = vector.broadcast %286 : vector<4x1xf32> to vector<4x32xf32>
    %288 = arith.mulf %90, %287 : vector<4x32xf32>
    %289 = arith.mulf %286, %94 : vector<4x1xf32>
    %290 = arith.subf %279, %289 : vector<4x1xf32>
    %291 = vector.broadcast %290 : vector<4x1xf32> to vector<4x32xf32>
    %292 = arith.addf %288, %291 : vector<4x32xf32>
    %cst_61 = arith.constant 0.000000e+00 : f32
    %293 = vector.broadcast %cst_61 : f32 to vector<4x32xf32>
    %294 = arith.maximumf %292, %293 : vector<4x32xf32>
    %cst_62 = arith.constant dense<0.000000e+00> : vector<4xf32>
    %295 = vector.multi_reduction <add>, %294, %cst_62 [1] : vector<4x32xf32> to vector<4xf32>
    %296 = vector.shape_cast %295 : vector<4xf32> to vector<4x1xf32>
    %cst_63 = arith.constant 3.125000e-02 : f32
    %297 = vector.broadcast %cst_63 : f32 to vector<4x1xf32>
    %298 = arith.mulf %296, %297 : vector<4x1xf32>
    %299 = vector.broadcast %298 : vector<4x1xf32> to vector<4x32xf32>
    %300 = arith.subf %294, %299 : vector<4x32xf32>
    %301 = arith.mulf %300, %300 : vector<4x32xf32>
    %cst_64 = arith.constant dense<0.000000e+00> : vector<4xf32>
    %302 = vector.multi_reduction <add>, %301, %cst_64 [1] : vector<4x32xf32> to vector<4xf32>
    %303 = vector.shape_cast %302 : vector<4xf32> to vector<4x1xf32>
    %cst_65 = arith.constant 3.125000e-02 : f32
    %304 = vector.broadcast %cst_65 : f32 to vector<4x1xf32>
    %305 = arith.mulf %303, %304 : vector<4x1xf32>
    %306 = arith.mulf %281, %305 : vector<4x1xf32>
    %cst_66 = arith.constant 9.99999974E-6 : f32
    %307 = vector.broadcast %cst_66 : f32 to vector<4x1xf32>
    %308 = arith.addf %306, %307 : vector<4x1xf32>
    %309 = math.rsqrt %308 : vector<4x1xf32>
    %310 = arith.mulf %280, %309 : vector<4x1xf32>
    %311 = vector.broadcast %298 : vector<4x1xf32> to vector<4x32xf32>
    %312 = arith.subf %294, %311 : vector<4x32xf32>
    %313 = vector.broadcast %310 : vector<4x1xf32> to vector<4x32xf32>
    %314 = arith.mulf %312, %313 : vector<4x32xf32>
    %315 = vector.broadcast %282 : vector<4x1xf32> to vector<4x32xf32>
    %316 = arith.addf %314, %315 : vector<4x32xf32>
    %cst_67 = arith.constant 0.000000e+00 : f32
    %317 = vector.broadcast %cst_67 : f32 to vector<4x32xf32>
    %318 = arith.maximumf %316, %317 : vector<4x32xf32>
    %319 = vector.extract_strided_slice %1 {offsets = [40, 4], sizes = [20, 4], strides = [1, 1]} : vector<80x16xf32> to vector<20x4xf32>
    %cst_68 = arith.constant dense<0.000000e+00> : vector<20x32xf32>
    %320 = tpu.matmul %319, %318, %cst_68 {dimension_numbers = #tpu.dot_dimension_numbers<[1], [0], [0], [1], [0, 0, 1, 1], [], []>} : vector<20x4xf32>, vector<4x32xf32>, vector<20x32xf32> -> vector<20x32xf32>
    %321 = arith.addf %277, %320 : vector<20x32xf32>
    %322 = vector.extract_strided_slice %0 {offsets = [8, 12], sizes = [4, 1], strides = [1, 1]} : vector<16x24xf32> to vector<4x1xf32>
    %323 = vector.extract_strided_slice %0 {offsets = [8, 13], sizes = [4, 1], strides = [1, 1]} : vector<16x24xf32> to vector<4x1xf32>
    %324 = vector.extract_strided_slice %0 {offsets = [8, 14], sizes = [4, 1], strides = [1, 1]} : vector<16x24xf32> to vector<4x1xf32>
    %325 = vector.extract_strided_slice %0 {offsets = [8, 15], sizes = [4, 1], strides = [1, 1]} : vector<16x24xf32> to vector<4x1xf32>
    %326 = vector.extract_strided_slice %0 {offsets = [8, 16], sizes = [4, 1], strides = [1, 1]} : vector<16x24xf32> to vector<4x1xf32>
    %cst_69 = arith.constant 9.99999974E-6 : f32
    %327 = vector.broadcast %cst_69 : f32 to vector<4x1xf32>
    %328 = arith.addf %232, %327 : vector<4x1xf32>
    %329 = math.rsqrt %328 : vector<4x1xf32>
    %330 = arith.mulf %322, %329 : vector<4x1xf32>
    %331 = vector.broadcast %330 : vector<4x1xf32> to vector<4x32xf32>
    %332 = arith.mulf %221, %331 : vector<4x32xf32>
    %333 = arith.mulf %330, %225 : vector<4x1xf32>
    %334 = arith.subf %323, %333 : vector<4x1xf32>
    %335 = vector.broadcast %334 : vector<4x1xf32> to vector<4x32xf32>
    %336 = arith.addf %332, %335 : vector<4x32xf32>
    %cst_70 = arith.constant 0.000000e+00 : f32
    %337 = vector.broadcast %cst_70 : f32 to vector<4x32xf32>
    %338 = arith.maximumf %336, %337 : vector<4x32xf32>
    %cst_71 = arith.constant dense<0.000000e+00> : vector<4xf32>
    %339 = vector.multi_reduction <add>, %338, %cst_71 [1] : vector<4x32xf32> to vector<4xf32>
    %340 = vector.shape_cast %339 : vector<4xf32> to vector<4x1xf32>
    %cst_72 = arith.constant 3.125000e-02 : f32
    %341 = vector.broadcast %cst_72 : f32 to vector<4x1xf32>
    %342 = arith.mulf %340, %341 : vector<4x1xf32>
    %343 = vector.broadcast %342 : vector<4x1xf32> to vector<4x32xf32>
    %344 = arith.subf %338, %343 : vector<4x32xf32>
    %345 = arith.mulf %344, %344 : vector<4x32xf32>
    %cst_73 = arith.constant dense<0.000000e+00> : vector<4xf32>
    %346 = vector.multi_reduction <add>, %345, %cst_73 [1] : vector<4x32xf32> to vector<4xf32>
    %347 = vector.shape_cast %346 : vector<4xf32> to vector<4x1xf32>
    %cst_74 = arith.constant 3.125000e-02 : f32
    %348 = vector.broadcast %cst_74 : f32 to vector<4x1xf32>
    %349 = arith.mulf %347, %348 : vector<4x1xf32>
    %350 = arith.mulf %325, %349 : vector<4x1xf32>
    %cst_75 = arith.constant 9.99999974E-6 : f32
    %351 = vector.broadcast %cst_75 : f32 to vector<4x1xf32>
    %352 = arith.addf %350, %351 : vector<4x1xf32>
    %353 = math.rsqrt %352 : vector<4x1xf32>
    %354 = arith.mulf %324, %353 : vector<4x1xf32>
    %355 = vector.broadcast %342 : vector<4x1xf32> to vector<4x32xf32>
    %356 = arith.subf %338, %355 : vector<4x32xf32>
    %357 = vector.broadcast %354 : vector<4x1xf32> to vector<4x32xf32>
    %358 = arith.mulf %356, %357 : vector<4x32xf32>
    %359 = vector.broadcast %326 : vector<4x1xf32> to vector<4x32xf32>
    %360 = arith.addf %358, %359 : vector<4x32xf32>
    %cst_76 = arith.constant 0.000000e+00 : f32
    %361 = vector.broadcast %cst_76 : f32 to vector<4x32xf32>
    %362 = arith.maximumf %360, %361 : vector<4x32xf32>
    %363 = vector.extract_strided_slice %1 {offsets = [40, 8], sizes = [20, 4], strides = [1, 1]} : vector<80x16xf32> to vector<20x4xf32>
    %cst_77 = arith.constant dense<0.000000e+00> : vector<20x32xf32>
    %364 = tpu.matmul %363, %362, %cst_77 {dimension_numbers = #tpu.dot_dimension_numbers<[1], [0], [0], [1], [0, 0, 1, 1], [], []>} : vector<20x4xf32>, vector<4x32xf32>, vector<20x32xf32> -> vector<20x32xf32>
    %365 = arith.addf %321, %364 : vector<20x32xf32>
    %c0_i32_78 = arith.constant 0 : i32
    %366 = arith.sitofp %c0_i32_78 : i32 to f32
    %367 = vector.broadcast %366 : f32 to vector<20x2xf32>
    %368 = tpu.concatenate %367, %365 in 1 : vector<20x2xf32>, vector<20x32xf32> -> vector<20x34xf32>
    %369 = vector.broadcast %366 : f32 to vector<20x2xf32>
    %370 = tpu.concatenate %368, %369 in 1 : vector<20x34xf32>, vector<20x2xf32> -> vector<20x36xf32>
    %cst_79 = arith.constant 0.000000e+00 : f32
    %371 = vector.broadcast %cst_79 : f32 to vector<4x32xf32>
    %372 = vector.extract_strided_slice %370 {offsets = [0, 0], sizes = [4, 32], strides = [1, 1]} : vector<20x36xf32> to vector<4x32xf32>
    %373 = vector.extract_strided_slice %2 {offsets = [0, 0], sizes = [1, 32], strides = [1, 1]} : vector<5x32xf32> to vector<1x32xf32>
    %374 = vector.broadcast %373 : vector<1x32xf32> to vector<4x32xf32>
    %375 = arith.mulf %372, %374 : vector<4x32xf32>
    %376 = arith.addf %371, %375 : vector<4x32xf32>
    %377 = vector.extract_strided_slice %370 {offsets = [4, 1], sizes = [4, 32], strides = [1, 1]} : vector<20x36xf32> to vector<4x32xf32>
    %378 = vector.extract_strided_slice %2 {offsets = [1, 0], sizes = [1, 32], strides = [1, 1]} : vector<5x32xf32> to vector<1x32xf32>
    %379 = vector.broadcast %378 : vector<1x32xf32> to vector<4x32xf32>
    %380 = arith.mulf %377, %379 : vector<4x32xf32>
    %381 = arith.addf %376, %380 : vector<4x32xf32>
    %382 = vector.extract_strided_slice %370 {offsets = [8, 2], sizes = [4, 32], strides = [1, 1]} : vector<20x36xf32> to vector<4x32xf32>
    %383 = arith.addf %381, %382 : vector<4x32xf32>
    %384 = vector.extract_strided_slice %370 {offsets = [12, 3], sizes = [4, 32], strides = [1, 1]} : vector<20x36xf32> to vector<4x32xf32>
    %385 = vector.extract_strided_slice %2 {offsets = [3, 0], sizes = [1, 32], strides = [1, 1]} : vector<5x32xf32> to vector<1x32xf32>
    %386 = vector.broadcast %385 : vector<1x32xf32> to vector<4x32xf32>
    %387 = arith.mulf %384, %386 : vector<4x32xf32>
    %388 = arith.addf %383, %387 : vector<4x32xf32>
    %389 = vector.extract_strided_slice %370 {offsets = [16, 4], sizes = [4, 32], strides = [1, 1]} : vector<20x36xf32> to vector<4x32xf32>
    %390 = vector.extract_strided_slice %2 {offsets = [4, 0], sizes = [1, 32], strides = [1, 1]} : vector<5x32xf32> to vector<1x32xf32>
    %391 = vector.broadcast %390 : vector<1x32xf32> to vector<4x32xf32>
    %392 = arith.mulf %389, %391 : vector<4x32xf32>
    %393 = arith.addf %388, %392 : vector<4x32xf32>
    %394 = vector.extract_strided_slice %0 {offsets = [0, 17], sizes = [4, 1], strides = [1, 1]} : vector<16x24xf32> to vector<4x1xf32>
    %395 = vector.broadcast %394 : vector<4x1xf32> to vector<4x32xf32>
    %396 = arith.addf %393, %395 : vector<4x32xf32>
    %cst_80 = arith.constant dense<0.000000e+00> : vector<4xf32>
    %397 = vector.multi_reduction <add>, %396, %cst_80 [1] : vector<4x32xf32> to vector<4xf32>
    %398 = vector.shape_cast %397 : vector<4xf32> to vector<4x1xf32>
    %cst_81 = arith.constant 3.125000e-02 : f32
    %399 = vector.broadcast %cst_81 : f32 to vector<4x1xf32>
    %400 = arith.mulf %398, %399 : vector<4x1xf32>
    %401 = vector.broadcast %400 : vector<4x1xf32> to vector<4x32xf32>
    %402 = arith.subf %396, %401 : vector<4x32xf32>
    %403 = arith.mulf %402, %402 : vector<4x32xf32>
    %cst_82 = arith.constant dense<0.000000e+00> : vector<4xf32>
    %404 = vector.multi_reduction <add>, %403, %cst_82 [1] : vector<4x32xf32> to vector<4xf32>
    %405 = vector.shape_cast %404 : vector<4xf32> to vector<4x1xf32>
    %cst_83 = arith.constant 3.125000e-02 : f32
    %406 = vector.broadcast %cst_83 : f32 to vector<4x1xf32>
    %407 = arith.mulf %405, %406 : vector<4x1xf32>
    %cst_84 = arith.constant 0.000000e+00 : f32
    %408 = vector.broadcast %cst_84 : f32 to vector<20x32xf32>
    %409 = vector.extract_strided_slice %0 {offsets = [0, 18], sizes = [4, 1], strides = [1, 1]} : vector<16x24xf32> to vector<4x1xf32>
    %410 = vector.extract_strided_slice %0 {offsets = [0, 19], sizes = [4, 1], strides = [1, 1]} : vector<16x24xf32> to vector<4x1xf32>
    %411 = vector.extract_strided_slice %0 {offsets = [0, 20], sizes = [4, 1], strides = [1, 1]} : vector<16x24xf32> to vector<4x1xf32>
    %412 = vector.extract_strided_slice %0 {offsets = [0, 21], sizes = [4, 1], strides = [1, 1]} : vector<16x24xf32> to vector<4x1xf32>
    %413 = vector.extract_strided_slice %0 {offsets = [0, 22], sizes = [4, 1], strides = [1, 1]} : vector<16x24xf32> to vector<4x1xf32>
    %cst_85 = arith.constant 9.99999974E-6 : f32
    %414 = vector.broadcast %cst_85 : f32 to vector<4x1xf32>
    %415 = arith.addf %14, %414 : vector<4x1xf32>
    %416 = math.rsqrt %415 : vector<4x1xf32>
    %417 = arith.mulf %409, %416 : vector<4x1xf32>
    %418 = vector.broadcast %417 : vector<4x1xf32> to vector<4x32xf32>
    %419 = arith.mulf %3, %418 : vector<4x32xf32>
    %420 = arith.mulf %417, %7 : vector<4x1xf32>
    %421 = arith.subf %410, %420 : vector<4x1xf32>
    %422 = vector.broadcast %421 : vector<4x1xf32> to vector<4x32xf32>
    %423 = arith.addf %419, %422 : vector<4x32xf32>
    %cst_86 = arith.constant 0.000000e+00 : f32
    %424 = vector.broadcast %cst_86 : f32 to vector<4x32xf32>
    %425 = arith.maximumf %423, %424 : vector<4x32xf32>
    %cst_87 = arith.constant dense<0.000000e+00> : vector<4xf32>
    %426 = vector.multi_reduction <add>, %425, %cst_87 [1] : vector<4x32xf32> to vector<4xf32>
    %427 = vector.shape_cast %426 : vector<4xf32> to vector<4x1xf32>
    %cst_88 = arith.constant 3.125000e-02 : f32
    %428 = vector.broadcast %cst_88 : f32 to vector<4x1xf32>
    %429 = arith.mulf %427, %428 : vector<4x1xf32>
    %430 = vector.broadcast %429 : vector<4x1xf32> to vector<4x32xf32>
    %431 = arith.subf %425, %430 : vector<4x32xf32>
    %432 = arith.mulf %431, %431 : vector<4x32xf32>
    %cst_89 = arith.constant dense<0.000000e+00> : vector<4xf32>
    %433 = vector.multi_reduction <add>, %432, %cst_89 [1] : vector<4x32xf32> to vector<4xf32>
    %434 = vector.shape_cast %433 : vector<4xf32> to vector<4x1xf32>
    %cst_90 = arith.constant 3.125000e-02 : f32
    %435 = vector.broadcast %cst_90 : f32 to vector<4x1xf32>
    %436 = arith.mulf %434, %435 : vector<4x1xf32>
    %437 = arith.mulf %412, %436 : vector<4x1xf32>
    %cst_91 = arith.constant 9.99999974E-6 : f32
    %438 = vector.broadcast %cst_91 : f32 to vector<4x1xf32>
    %439 = arith.addf %437, %438 : vector<4x1xf32>
    %440 = math.rsqrt %439 : vector<4x1xf32>
    %441 = arith.mulf %411, %440 : vector<4x1xf32>
    %442 = vector.broadcast %429 : vector<4x1xf32> to vector<4x32xf32>
    %443 = arith.subf %425, %442 : vector<4x32xf32>
    %444 = vector.broadcast %441 : vector<4x1xf32> to vector<4x32xf32>
    %445 = arith.mulf %443, %444 : vector<4x32xf32>
    %446 = vector.broadcast %413 : vector<4x1xf32> to vector<4x32xf32>
    %447 = arith.addf %445, %446 : vector<4x32xf32>
    %cst_92 = arith.constant 0.000000e+00 : f32
    %448 = vector.broadcast %cst_92 : f32 to vector<4x32xf32>
    %449 = arith.maximumf %447, %448 : vector<4x32xf32>
    %450 = vector.extract_strided_slice %1 {offsets = [60, 0], sizes = [20, 4], strides = [1, 1]} : vector<80x16xf32> to vector<20x4xf32>
    %cst_93 = arith.constant dense<0.000000e+00> : vector<20x32xf32>
    %451 = tpu.matmul %450, %449, %cst_93 {dimension_numbers = #tpu.dot_dimension_numbers<[1], [0], [0], [1], [0, 0, 1, 1], [], []>} : vector<20x4xf32>, vector<4x32xf32>, vector<20x32xf32> -> vector<20x32xf32>
    %452 = arith.addf %408, %451 : vector<20x32xf32>
    %453 = vector.extract_strided_slice %0 {offsets = [4, 18], sizes = [4, 1], strides = [1, 1]} : vector<16x24xf32> to vector<4x1xf32>
    %454 = vector.extract_strided_slice %0 {offsets = [4, 19], sizes = [4, 1], strides = [1, 1]} : vector<16x24xf32> to vector<4x1xf32>
    %455 = vector.extract_strided_slice %0 {offsets = [4, 20], sizes = [4, 1], strides = [1, 1]} : vector<16x24xf32> to vector<4x1xf32>
    %456 = vector.extract_strided_slice %0 {offsets = [4, 21], sizes = [4, 1], strides = [1, 1]} : vector<16x24xf32> to vector<4x1xf32>
    %457 = vector.extract_strided_slice %0 {offsets = [4, 22], sizes = [4, 1], strides = [1, 1]} : vector<16x24xf32> to vector<4x1xf32>
    %cst_94 = arith.constant 9.99999974E-6 : f32
    %458 = vector.broadcast %cst_94 : f32 to vector<4x1xf32>
    %459 = arith.addf %101, %458 : vector<4x1xf32>
    %460 = math.rsqrt %459 : vector<4x1xf32>
    %461 = arith.mulf %453, %460 : vector<4x1xf32>
    %462 = vector.broadcast %461 : vector<4x1xf32> to vector<4x32xf32>
    %463 = arith.mulf %90, %462 : vector<4x32xf32>
    %464 = arith.mulf %461, %94 : vector<4x1xf32>
    %465 = arith.subf %454, %464 : vector<4x1xf32>
    %466 = vector.broadcast %465 : vector<4x1xf32> to vector<4x32xf32>
    %467 = arith.addf %463, %466 : vector<4x32xf32>
    %cst_95 = arith.constant 0.000000e+00 : f32
    %468 = vector.broadcast %cst_95 : f32 to vector<4x32xf32>
    %469 = arith.maximumf %467, %468 : vector<4x32xf32>
    %cst_96 = arith.constant dense<0.000000e+00> : vector<4xf32>
    %470 = vector.multi_reduction <add>, %469, %cst_96 [1] : vector<4x32xf32> to vector<4xf32>
    %471 = vector.shape_cast %470 : vector<4xf32> to vector<4x1xf32>
    %cst_97 = arith.constant 3.125000e-02 : f32
    %472 = vector.broadcast %cst_97 : f32 to vector<4x1xf32>
    %473 = arith.mulf %471, %472 : vector<4x1xf32>
    %474 = vector.broadcast %473 : vector<4x1xf32> to vector<4x32xf32>
    %475 = arith.subf %469, %474 : vector<4x32xf32>
    %476 = arith.mulf %475, %475 : vector<4x32xf32>
    %cst_98 = arith.constant dense<0.000000e+00> : vector<4xf32>
    %477 = vector.multi_reduction <add>, %476, %cst_98 [1] : vector<4x32xf32> to vector<4xf32>
    %478 = vector.shape_cast %477 : vector<4xf32> to vector<4x1xf32>
    %cst_99 = arith.constant 3.125000e-02 : f32
    %479 = vector.broadcast %cst_99 : f32 to vector<4x1xf32>
    %480 = arith.mulf %478, %479 : vector<4x1xf32>
    %481 = arith.mulf %456, %480 : vector<4x1xf32>
    %cst_100 = arith.constant 9.99999974E-6 : f32
    %482 = vector.broadcast %cst_100 : f32 to vector<4x1xf32>
    %483 = arith.addf %481, %482 : vector<4x1xf32>
    %484 = math.rsqrt %483 : vector<4x1xf32>
    %485 = arith.mulf %455, %484 : vector<4x1xf32>
    %486 = vector.broadcast %473 : vector<4x1xf32> to vector<4x32xf32>
    %487 = arith.subf %469, %486 : vector<4x32xf32>
    %488 = vector.broadcast %485 : vector<4x1xf32> to vector<4x32xf32>
    %489 = arith.mulf %487, %488 : vector<4x32xf32>
    %490 = vector.broadcast %457 : vector<4x1xf32> to vector<4x32xf32>
    %491 = arith.addf %489, %490 : vector<4x32xf32>
    %cst_101 = arith.constant 0.000000e+00 : f32
    %492 = vector.broadcast %cst_101 : f32 to vector<4x32xf32>
    %493 = arith.maximumf %491, %492 : vector<4x32xf32>
    %494 = vector.extract_strided_slice %1 {offsets = [60, 4], sizes = [20, 4], strides = [1, 1]} : vector<80x16xf32> to vector<20x4xf32>
    %cst_102 = arith.constant dense<0.000000e+00> : vector<20x32xf32>
    %495 = tpu.matmul %494, %493, %cst_102 {dimension_numbers = #tpu.dot_dimension_numbers<[1], [0], [0], [1], [0, 0, 1, 1], [], []>} : vector<20x4xf32>, vector<4x32xf32>, vector<20x32xf32> -> vector<20x32xf32>
    %496 = arith.addf %452, %495 : vector<20x32xf32>
    %497 = vector.extract_strided_slice %0 {offsets = [8, 18], sizes = [4, 1], strides = [1, 1]} : vector<16x24xf32> to vector<4x1xf32>
    %498 = vector.extract_strided_slice %0 {offsets = [8, 19], sizes = [4, 1], strides = [1, 1]} : vector<16x24xf32> to vector<4x1xf32>
    %499 = vector.extract_strided_slice %0 {offsets = [8, 20], sizes = [4, 1], strides = [1, 1]} : vector<16x24xf32> to vector<4x1xf32>
    %500 = vector.extract_strided_slice %0 {offsets = [8, 21], sizes = [4, 1], strides = [1, 1]} : vector<16x24xf32> to vector<4x1xf32>
    %501 = vector.extract_strided_slice %0 {offsets = [8, 22], sizes = [4, 1], strides = [1, 1]} : vector<16x24xf32> to vector<4x1xf32>
    %cst_103 = arith.constant 9.99999974E-6 : f32
    %502 = vector.broadcast %cst_103 : f32 to vector<4x1xf32>
    %503 = arith.addf %232, %502 : vector<4x1xf32>
    %504 = math.rsqrt %503 : vector<4x1xf32>
    %505 = arith.mulf %497, %504 : vector<4x1xf32>
    %506 = vector.broadcast %505 : vector<4x1xf32> to vector<4x32xf32>
    %507 = arith.mulf %221, %506 : vector<4x32xf32>
    %508 = arith.mulf %505, %225 : vector<4x1xf32>
    %509 = arith.subf %498, %508 : vector<4x1xf32>
    %510 = vector.broadcast %509 : vector<4x1xf32> to vector<4x32xf32>
    %511 = arith.addf %507, %510 : vector<4x32xf32>
    %cst_104 = arith.constant 0.000000e+00 : f32
    %512 = vector.broadcast %cst_104 : f32 to vector<4x32xf32>
    %513 = arith.maximumf %511, %512 : vector<4x32xf32>
    %cst_105 = arith.constant dense<0.000000e+00> : vector<4xf32>
    %514 = vector.multi_reduction <add>, %513, %cst_105 [1] : vector<4x32xf32> to vector<4xf32>
    %515 = vector.shape_cast %514 : vector<4xf32> to vector<4x1xf32>
    %cst_106 = arith.constant 3.125000e-02 : f32
    %516 = vector.broadcast %cst_106 : f32 to vector<4x1xf32>
    %517 = arith.mulf %515, %516 : vector<4x1xf32>
    %518 = vector.broadcast %517 : vector<4x1xf32> to vector<4x32xf32>
    %519 = arith.subf %513, %518 : vector<4x32xf32>
    %520 = arith.mulf %519, %519 : vector<4x32xf32>
    %cst_107 = arith.constant dense<0.000000e+00> : vector<4xf32>
    %521 = vector.multi_reduction <add>, %520, %cst_107 [1] : vector<4x32xf32> to vector<4xf32>
    %522 = vector.shape_cast %521 : vector<4xf32> to vector<4x1xf32>
    %cst_108 = arith.constant 3.125000e-02 : f32
    %523 = vector.broadcast %cst_108 : f32 to vector<4x1xf32>
    %524 = arith.mulf %522, %523 : vector<4x1xf32>
    %525 = arith.mulf %500, %524 : vector<4x1xf32>
    %cst_109 = arith.constant 9.99999974E-6 : f32
    %526 = vector.broadcast %cst_109 : f32 to vector<4x1xf32>
    %527 = arith.addf %525, %526 : vector<4x1xf32>
    %528 = math.rsqrt %527 : vector<4x1xf32>
    %529 = arith.mulf %499, %528 : vector<4x1xf32>
    %530 = vector.broadcast %517 : vector<4x1xf32> to vector<4x32xf32>
    %531 = arith.subf %513, %530 : vector<4x32xf32>
    %532 = vector.broadcast %529 : vector<4x1xf32> to vector<4x32xf32>
    %533 = arith.mulf %531, %532 : vector<4x32xf32>
    %534 = vector.broadcast %501 : vector<4x1xf32> to vector<4x32xf32>
    %535 = arith.addf %533, %534 : vector<4x32xf32>
    %cst_110 = arith.constant 0.000000e+00 : f32
    %536 = vector.broadcast %cst_110 : f32 to vector<4x32xf32>
    %537 = arith.maximumf %535, %536 : vector<4x32xf32>
    %538 = vector.extract_strided_slice %1 {offsets = [60, 8], sizes = [20, 4], strides = [1, 1]} : vector<80x16xf32> to vector<20x4xf32>
    %cst_111 = arith.constant dense<0.000000e+00> : vector<20x32xf32>
    %539 = tpu.matmul %538, %537, %cst_111 {dimension_numbers = #tpu.dot_dimension_numbers<[1], [0], [0], [1], [0, 0, 1, 1], [], []>} : vector<20x4xf32>, vector<4x32xf32>, vector<20x32xf32> -> vector<20x32xf32>
    %540 = arith.addf %496, %539 : vector<20x32xf32>
    %541 = vector.extract_strided_slice %0 {offsets = [12, 18], sizes = [4, 1], strides = [1, 1]} : vector<16x24xf32> to vector<4x1xf32>
    %542 = vector.extract_strided_slice %0 {offsets = [12, 19], sizes = [4, 1], strides = [1, 1]} : vector<16x24xf32> to vector<4x1xf32>
    %543 = vector.extract_strided_slice %0 {offsets = [12, 20], sizes = [4, 1], strides = [1, 1]} : vector<16x24xf32> to vector<4x1xf32>
    %544 = vector.extract_strided_slice %0 {offsets = [12, 21], sizes = [4, 1], strides = [1, 1]} : vector<16x24xf32> to vector<4x1xf32>
    %545 = vector.extract_strided_slice %0 {offsets = [12, 22], sizes = [4, 1], strides = [1, 1]} : vector<16x24xf32> to vector<4x1xf32>
    %cst_112 = arith.constant 9.99999974E-6 : f32
    %546 = vector.broadcast %cst_112 : f32 to vector<4x1xf32>
    %547 = arith.addf %407, %546 : vector<4x1xf32>
    %548 = math.rsqrt %547 : vector<4x1xf32>
    %549 = arith.mulf %541, %548 : vector<4x1xf32>
    %550 = vector.broadcast %549 : vector<4x1xf32> to vector<4x32xf32>
    %551 = arith.mulf %396, %550 : vector<4x32xf32>
    %552 = arith.mulf %549, %400 : vector<4x1xf32>
    %553 = arith.subf %542, %552 : vector<4x1xf32>
    %554 = vector.broadcast %553 : vector<4x1xf32> to vector<4x32xf32>
    %555 = arith.addf %551, %554 : vector<4x32xf32>
    %cst_113 = arith.constant 0.000000e+00 : f32
    %556 = vector.broadcast %cst_113 : f32 to vector<4x32xf32>
    %557 = arith.maximumf %555, %556 : vector<4x32xf32>
    %cst_114 = arith.constant dense<0.000000e+00> : vector<4xf32>
    %558 = vector.multi_reduction <add>, %557, %cst_114 [1] : vector<4x32xf32> to vector<4xf32>
    %559 = vector.shape_cast %558 : vector<4xf32> to vector<4x1xf32>
    %cst_115 = arith.constant 3.125000e-02 : f32
    %560 = vector.broadcast %cst_115 : f32 to vector<4x1xf32>
    %561 = arith.mulf %559, %560 : vector<4x1xf32>
    %562 = vector.broadcast %561 : vector<4x1xf32> to vector<4x32xf32>
    %563 = arith.subf %557, %562 : vector<4x32xf32>
    %564 = arith.mulf %563, %563 : vector<4x32xf32>
    %cst_116 = arith.constant dense<0.000000e+00> : vector<4xf32>
    %565 = vector.multi_reduction <add>, %564, %cst_116 [1] : vector<4x32xf32> to vector<4xf32>
    %566 = vector.shape_cast %565 : vector<4xf32> to vector<4x1xf32>
    %cst_117 = arith.constant 3.125000e-02 : f32
    %567 = vector.broadcast %cst_117 : f32 to vector<4x1xf32>
    %568 = arith.mulf %566, %567 : vector<4x1xf32>
    %569 = arith.mulf %544, %568 : vector<4x1xf32>
    %cst_118 = arith.constant 9.99999974E-6 : f32
    %570 = vector.broadcast %cst_118 : f32 to vector<4x1xf32>
    %571 = arith.addf %569, %570 : vector<4x1xf32>
    %572 = math.rsqrt %571 : vector<4x1xf32>
    %573 = arith.mulf %543, %572 : vector<4x1xf32>
    %574 = vector.broadcast %561 : vector<4x1xf32> to vector<4x32xf32>
    %575 = arith.subf %557, %574 : vector<4x32xf32>
    %576 = vector.broadcast %573 : vector<4x1xf32> to vector<4x32xf32>
    %577 = arith.mulf %575, %576 : vector<4x32xf32>
    %578 = vector.broadcast %545 : vector<4x1xf32> to vector<4x32xf32>
    %579 = arith.addf %577, %578 : vector<4x32xf32>
    %cst_119 = arith.constant 0.000000e+00 : f32
    %580 = vector.broadcast %cst_119 : f32 to vector<4x32xf32>
    %581 = arith.maximumf %579, %580 : vector<4x32xf32>
    %582 = vector.extract_strided_slice %1 {offsets = [60, 12], sizes = [20, 4], strides = [1, 1]} : vector<80x16xf32> to vector<20x4xf32>
    %cst_120 = arith.constant dense<0.000000e+00> : vector<20x32xf32>
    %583 = tpu.matmul %582, %581, %cst_120 {dimension_numbers = #tpu.dot_dimension_numbers<[1], [0], [0], [1], [0, 0, 1, 1], [], []>} : vector<20x4xf32>, vector<4x32xf32>, vector<20x32xf32> -> vector<20x32xf32>
    %584 = arith.addf %540, %583 : vector<20x32xf32>
    %c0_i32_121 = arith.constant 0 : i32
    %585 = arith.sitofp %c0_i32_121 : i32 to f32
    %586 = vector.broadcast %585 : f32 to vector<20x2xf32>
    %587 = tpu.concatenate %586, %584 in 1 : vector<20x2xf32>, vector<20x32xf32> -> vector<20x34xf32>
    %588 = vector.broadcast %585 : f32 to vector<20x2xf32>
    %589 = tpu.concatenate %587, %588 in 1 : vector<20x34xf32>, vector<20x2xf32> -> vector<20x36xf32>
    %cst_122 = arith.constant 0.000000e+00 : f32
    %590 = vector.broadcast %cst_122 : f32 to vector<4x32xf32>
    %591 = vector.extract_strided_slice %589 {offsets = [0, 0], sizes = [4, 32], strides = [1, 1]} : vector<20x36xf32> to vector<4x32xf32>
    %592 = vector.extract_strided_slice %2 {offsets = [0, 0], sizes = [1, 32], strides = [1, 1]} : vector<5x32xf32> to vector<1x32xf32>
    %593 = vector.broadcast %592 : vector<1x32xf32> to vector<4x32xf32>
    %594 = arith.mulf %591, %593 : vector<4x32xf32>
    %595 = arith.addf %590, %594 : vector<4x32xf32>
    %596 = vector.extract_strided_slice %589 {offsets = [4, 1], sizes = [4, 32], strides = [1, 1]} : vector<20x36xf32> to vector<4x32xf32>
    %597 = vector.extract_strided_slice %2 {offsets = [1, 0], sizes = [1, 32], strides = [1, 1]} : vector<5x32xf32> to vector<1x32xf32>
    %598 = vector.broadcast %597 : vector<1x32xf32> to vector<4x32xf32>
    %599 = arith.mulf %596, %598 : vector<4x32xf32>
    %600 = arith.addf %595, %599 : vector<4x32xf32>
    %601 = vector.extract_strided_slice %589 {offsets = [8, 2], sizes = [4, 32], strides = [1, 1]} : vector<20x36xf32> to vector<4x32xf32>
    %602 = arith.addf %600, %601 : vector<4x32xf32>
    %603 = vector.extract_strided_slice %589 {offsets = [12, 3], sizes = [4, 32], strides = [1, 1]} : vector<20x36xf32> to vector<4x32xf32>
    %604 = vector.extract_strided_slice %2 {offsets = [3, 0], sizes = [1, 32], strides = [1, 1]} : vector<5x32xf32> to vector<1x32xf32>
    %605 = vector.broadcast %604 : vector<1x32xf32> to vector<4x32xf32>
    %606 = arith.mulf %603, %605 : vector<4x32xf32>
    %607 = arith.addf %602, %606 : vector<4x32xf32>
    %608 = vector.extract_strided_slice %589 {offsets = [16, 4], sizes = [4, 32], strides = [1, 1]} : vector<20x36xf32> to vector<4x32xf32>
    %609 = vector.extract_strided_slice %2 {offsets = [4, 0], sizes = [1, 32], strides = [1, 1]} : vector<5x32xf32> to vector<1x32xf32>
    %610 = vector.broadcast %609 : vector<1x32xf32> to vector<4x32xf32>
    %611 = arith.mulf %608, %610 : vector<4x32xf32>
    %612 = arith.addf %607, %611 : vector<4x32xf32>
    %613 = vector.extract_strided_slice %0 {offsets = [0, 23], sizes = [4, 1], strides = [1, 1]} : vector<16x24xf32> to vector<4x1xf32>
    %614 = vector.broadcast %613 : vector<4x1xf32> to vector<4x32xf32>
    %615 = arith.addf %612, %614 : vector<4x32xf32>
    %c0_123 = arith.constant 0 : index
    %c0_124 = arith.constant 0 : index
    %616 = vector.load %arg4[%c0_123, %c0_124] : memref<4x32xf32, #tpu.memory_space<vmem>>, vector<4x32xf32>
    tpu.vector_store %arg4[%c0_123, %c0_124], %615 {strides = array<i32>} : memref<4x32xf32, #tpu.memory_space<vmem>>, vector<4x32xf32>,
    return
  }
}

</mosaic_0001>

<llo_original>
// kernel: tpu_custom_call.1
$region0: #{tpu_custom_call.1}
  #allocation0 [shape = 'u32[]', space=smem, size = 0x4, offset = 0x4, fixed_abs, tag = 'smem constant byte address 0x4 - core index']
  #allocation1 [shape = 'u32[144,128]{1,0:T(1,128)}', space=vmem, size = 0x12000, scoped, tag = 'internal scratch']
  %s0 = inlined_call_operand.vmem [shape: f32[4,32], index: 0, kind: input, shape index: {}]
  %s1 = inlined_call_operand.vmem [shape: f32[16,24], index: 1, kind: input, shape index: {}]
  %s2 = inlined_call_operand.vmem [shape: f32[80,16], index: 2, kind: input, shape index: {}]
  %s3 = inlined_call_operand.vmem [shape: f32[5,32], index: 3, kind: input, shape index: {}]
  %s4 = inlined_call_operand.hbm [shape: f32[4,32], index: 4, kind: output, shape index: {}]
  %s5 = sld [smem:[#allocation0]]
  $region26: #{tpu_custom_call.1} parent=0
    _
  %s7 = ssub.s32 1, %s5
  %s8 = scalar_select 0, %s7, %s5
  $region1: #{tpu_custom_call.1} parent=0
    #allocation2 [shape = 'u8[2048]{0}', space=vmem, size = 0x800, scoped, tag = 'output window, operand 0, single buffered']
    #allocation3 [shape = 's32[1]{0}', space=sflag, size = 0x4, scoped, tag = 'scoped memory for tpu_custom_call.1']
    %9 = vsyncpa [#allocation3], 0
    // Predicated region
    $region2: #{tpu_custom_call.1} parent=1 // pred_check
      _
    $region3: #{tpu_custom_call.1} parent=1 // pred_check_branch
      %11 = sbr.rel (0) target = $region5
    $region4: #{tpu_custom_call.1} parent=1 // pred_region
      _
    $region5: #{tpu_custom_call.1} parent=1 // pred_fallthru
      _
    // Predicated region
    $region6: #{tpu_custom_call.1} parent=1 // pred_check
      _
    $region7: #{tpu_custom_call.1} parent=1 // pred_check_branch
      %13 = sbr.rel (0) target = $region9
    $region8: #{tpu_custom_call.1} parent=1 // pred_region
      _
    $region9: #{tpu_custom_call.1} parent=1 // pred_fallthru
      _
    // Predicated region
    $region10: #{tpu_custom_call.1} parent=1 // pred_check
      _
    $region11: #{tpu_custom_call.1} parent=1 // pred_check_branch
      %15 = sbr.rel (0) target = $region13
    $region12: #{tpu_custom_call.1} parent=1 // pred_region
      _
    $region13: #{tpu_custom_call.1} parent=1 // pred_fallthru
      _
    // Predicated region
    $region14: #{tpu_custom_call.1} parent=1 // pred_check
      _
    $region15: #{tpu_custom_call.1} parent=1 // pred_check_branch
      %17 = sbr.rel (0) target = $region17
    $region16: #{tpu_custom_call.1} parent=1 // pred_region
      _
    $region17: #{tpu_custom_call.1} parent=1 // pred_fallthru
      _
    %v18 = vld [vmem:[%s1] sm:$0xff]
    %v19 = vld [vmem:[%s1 + $0x8] sm:$0xff]
    %v20 = vld [vmem:[%s2] sm:$0xff]
    %v21 = vld [vmem:[%s2 + $0x8] sm:$0xff]
    %v22 = vld [vmem:[%s2 + $0x10] sm:$0xff]
    %v23 = vld [vmem:[%s2 + $0x18] sm:$0xff]
    %v24 = vld [vmem:[%s2 + $0x20] sm:$0xff]
    %v25 = vld [vmem:[%s2 + $0x28] sm:$0xff]
    %v26 = vld [vmem:[%s2 + $0x30] sm:$0xff]
    %v27 = vld [vmem:[%s2 + $0x38] sm:$0xff]
    %v28 = vld [vmem:[%s2 + $0x40] sm:$0xff]
    %v29 = vld [vmem:[%s2 + $0x48] sm:$0xff]
    %v30 = vld [vmem:[%s3] sm:$0x1f]
    %v31 = vld [vmem:[%s0] sm:$0xf]
    %vm32 = vcmask 257024
    %v33 = vsel %vm32, %v31, 0.0
    %34 = vadd.xlane.f32.xlu0 %v33
    %v35 = vpop.xlane.xlu0 %34
    %v36 = vmul.f32 %v35, 0.03125
    %v37 = vsub.f32 %v31, %v36
    %v38 = vmul.f32 %v37, %v37
    %v39 = vsel %vm32, %v38, 0.0
    %40 = vadd.xlane.f32.xlu0 %v39
    %v41 = vpop.xlane.xlu0 %40
    %v42 = vmul.f32 %v41, 0.03125
    %v43 = vadd.f32 %v42, 1e-05
    %v44 = vrsqrt.pop %v43
    %v45 = vmul.f32 %v18, %v44
    %47 = vset.pattern.permute.xlu0 0
    %48 = vperm.xlu0 %47, %v45
    %v49 = vpop.permute.xlu0 %48
    %v51 = vmul.f32 %v31, %v49
    %v52 = vmul.f32 %v45, %v36
    %54 = vrot.lane.b32.xlu0 %v52, 1
    %v55 = vpop.permute.xlu0 %54
    %v57 = vsub.f32 %v18, %v55
    %59 = vset.pattern.permute.xlu0 1
    %60 = vperm.xlu0 %59, %v57
    %v61 = vpop.permute.xlu0 %60
    %v63 = vadd.f32 %v51, %v61
    %v64 = vmax.f32 %v63, 0.0
    %v65 = vsel %vm32, %v64, 0.0
    %66 = vadd.xlane.f32.xlu0 %v65
    %v67 = vpop.xlane.xlu0 %66
    %v68 = vmul.f32 %v67, 0.03125
    %v69 = vsub.f32 %v64, %v68
    %v70 = vmul.f32 %v69, %v69
    %v71 = vsel %vm32, %v70, 0.0
    %72 = vadd.xlane.f32.xlu0 %v71
    %v73 = vpop.xlane.xlu0 %72
    %v74 = vmul.f32 %v73, 0.03125
    %v75 = vmul.f32 %v18, %v74
    %v76 = vadd.f32 %v75, 1e-05
    %v77 = vrsqrt.pop %v76
    %79 = vrot.lane.b32.xlu0 %v77, 127
    %v80 = vpop.permute.xlu0 %79
    %v82 = vmul.f32 %v18, %v80
    %84 = vset.pattern.permute.xlu0 2
    %85 = vperm.xlu0 %84, %v82
    %v86 = vpop.permute.xlu0 %85
    %v88 = vmul.f32 %v69, %v86
    %90 = vset.pattern.permute.xlu0 4
    %91 = vperm.xlu0 %90, %v18
    %v92 = vpop.permute.xlu0 %91
    %v94 = vadd.f32 %v88, %v92
    %v95 = vmax.f32 %v94, 0.0
    %vm96 = vcmask 31744
    %v98 = vsel %vm96, %v20, 0
    %v101 = vsel %vm96, %v21, 0
    %v104 = vsel %vm96, %v22, 0
    %vm106 = vcmask 1043456
    %v108 = vsel %vm106, %v95, 0
    %110 = vmatprep.subr.mxu0 0.0
    %111 = vmatpush1.msra.mxu0 0.0
    %112 = vmatprep.subr.mxu0 0.0
    %113 = vmatpush1.msra.mxu0 0.0
    %114 = vmatprep.subr.mxu0 0.0
    %115 = vmatpush1.msra.mxu0 0.0
    %116 = vmatprep.subr.mxu0 0.0
    %117 = vmatpush1.msra.mxu0 0.0
    %118 = vmatprep.subr.mxu0 0.0
    %119 = vmatpush1.msra.mxu0 0.0
    %120 = vmatprep.subr.mxu0 0.0
    %121 = vmatpush1.msra.mxu0 0.0
    %122 = vmatprep.subr.mxu0 0.0
    %123 = vmatpush1.msra.mxu0 0.0
    %124 = vmatprep.subr.mxu0 0.0
    %125 = vmatpush1.msra.mxu0 0.0
    %126 = vmatprep.subr.mxu0 0.0
    %127 = vmatpush1.msra.mxu0 0.0
    %128 = vmatprep.subr.mxu0 0.0
    %129 = vmatpush1.msra.mxu0 0.0
    %130 = vmatprep.subr.mxu0 0.0
    %131 = vmatpush1.msra.mxu0 0.0
    %132 = vmatprep.subr.mxu0 0.0
    %133 = vmatpush1.msra.mxu0 0.0
    %134 = vmatprep.subr.mxu0 0.0
    %135 = vmatpush1.msra.mxu0 0.0
    %136 = vmatprep.subr.mxu0 0.0
    %137 = vmatpush1.msra.mxu0 0.0
    %138 = vmatprep.subr.mxu0 0.0
    %139 = vmatpush1.msra.mxu0 0.0
    %140 = vmatprep.subr.mxu0 0.0
    %141 = vmatpush1.msra.mxu0 %v108
    %142 = vmatprep.subr.mxu0 0.0
    %143 = vmatpush2.msra.mxu0 0.0
    %144 = vmatprep.subr.mxu0 0.0
    %145 = vmatpush2.msra.mxu0 0.0
    %146 = vmatprep.subr.mxu0 0.0
    %147 = vmatpush2.msra.mxu0 0.0
    %148 = vmatprep.subr.mxu0 0.0
    %149 = vmatpush2.msra.mxu0 0.0
    %150 = vmatprep.subr.mxu0 0.0
    %151 = vmatpush2.msra.mxu0 0.0
    %152 = vmatprep.subr.mxu0 0.0
    %153 = vmatpush2.msra.mxu0 0.0
    %154 = vmatprep.subr.mxu0 0.0
    %155 = vmatpush2.msra.mxu0 0.0
    %156 = vmatprep.subr.mxu0 0.0
    %157 = vmatpush2.msra.mxu0 0.0
    %158 = vmatprep.subr.mxu0 0.0
    %159 = vmatpush2.msra.mxu0 0.0
    %160 = vmatprep.subr.mxu0 0.0
    %161 = vmatpush2.msra.mxu0 0.0
    %162 = vmatprep.subr.mxu0 0.0
    %163 = vmatpush2.msra.mxu0 0.0
    %164 = vmatprep.subr.mxu0 0.0
    %165 = vmatpush2.msra.mxu0 0.0
    %166 = vmatprep.subr.mxu0 0.0
    %167 = vmatpush2.msra.mxu0 0.0
    %168 = vmatprep.subr.mxu0 0.0
    %169 = vmatpush2.msra.mxu0 0.0
    %170 = vmatprep.subr.mxu0 0.0
    %171 = vmatpush2.msra.mxu0 0.0
    %172 = vmatprep.subr.mxu0 0.0
    %173 = vmatpush2.msra.mxu0 0.0
    %174 = vmatprep.mubr.f32.mxu0 0.0
    %175 = vmatmul.mubr.f32.gmra.mxu0 %v98
    %v176 = vpop.f32.mrf.mxu0
    %v177 = vadd.f32 0.0, %v176
    %v178 = vpop.f32.mrf.mxu0
    %179 = vmatprep.mubr.f32.mxu0 0.0
    %180 = vmatmul.mubr.f32.gmra.mxu0 %v101
    %v181 = vpop.f32.mrf.mxu0
    %v182 = vadd.f32 0.0, %v181
    %v183 = vpop.f32.mrf.mxu0
    %184 = vmatprep.mubr.f32.mxu0 0.0
    %185 = vmatmul.mubr.f32.gmra.mxu0 %v104
    %v186 = vpop.f32.mrf.mxu0
    %v187 = vadd.f32 0.0, %v186
    %v188 = vpop.f32.mrf.mxu0
    %189 = vdwg.mxu0
    %193 = vrot.lane.b32.xlu0 %v177, 2
    %v194 = vpop.permute.xlu0 %193
    %195 = vrot.lane.b32.xlu0 %v182, 2
    %v196 = vpop.permute.xlu0 %195
    %197 = vrot.lane.b32.xlu0 %v187, 2
    %v198 = vpop.permute.xlu0 %197
    %vm202 = vcmask 15360
    %v203 = vsel %vm202, 0.0, %v194
    %v204 = vsel %vm202, 0.0, %v196
    %v205 = vsel %vm202, 0.0, %v198
    %vm206 = vcmask 277504
    %v207 = vsel %vm206, %v203, 0.0
    %v208 = vsel %vm206, %v204, 0.0
    %v209 = vsel %vm206, %v205, 0.0
    %v210 = vlaneseq
    %v211 = vshrl.u32 %v210, 7
    %v212 = vsub.s32 0, %v211
    %v213 = vrot.slane %v30, %v212
    %v214 = vmul.f32 %v207, %v213
    %v215 = vadd.f32 %v214, 0.0
    %v216 = vlaneseq
    %v217 = vshrl.u32 %v216, 7
    %v218 = vsub.s32 1, %v217
    %v219 = vrot.slane %v30, %v218
    %221 = vrot.lane.b32.xlu0 %v219, 1
    %v222 = vpop.permute.xlu0 %221
    %v224 = vmul.f32 %v207, %v222
    %v226 = vrot.slane %v224, 4
    %227 = vrot.lane.b32.xlu0 %v226, 127
    %v228 = vpop.permute.xlu0 %227
    %v230 = vadd.f32 %v215, %v228
    %232 = vrot.lane.b32.xlu0 %v208, 126
    %v233 = vpop.permute.xlu0 %232
    %v235 = vadd.f32 %v230, %v233
    %v236 = vlaneseq
    %v237 = vshrl.u32 %v236, 7
    %v238 = vsub.s32 3, %v237
    %v239 = vrot.slane %v30, %v238
    %241 = vrot.lane.b32.xlu0 %v239, 3
    %v242 = vpop.permute.xlu0 %241
    %v244 = vmul.f32 %v208, %v242
    %v246 = vrot.slane %v244, 4
    %247 = vrot.lane.b32.xlu0 %v246, 125
    %v248 = vpop.permute.xlu0 %247
    %v250 = vadd.f32 %v235, %v248
    %v251 = vlaneseq
    %v252 = vshrl.u32 %v251, 7
    %v253 = vsub.s32 4, %v252
    %v254 = vrot.slane %v30, %v253
    %256 = vrot.lane.b32.xlu0 %v254, 4
    %v257 = vpop.permute.xlu0 %256
    %v259 = vmul.f32 %v209, %v257
    %261 = vrot.lane.b32.xlu0 %v259, 124
    %v262 = vpop.permute.xlu0 %261
    %v264 = vadd.f32 %v250, %v262
    %265 = vset.pattern.permute.xlu0 5
    %266 = vperm.xlu0 %265, %v18
    %v267 = vpop.permute.xlu0 %266
    %v269 = vadd.f32 %v264, %v267
    %v270 = vsel %vm32, %v269, 0.0
    %271 = vadd.xlane.f32.xlu0 %v270
    %v272 = vpop.xlane.xlu0 %271
    %v273 = vmul.f32 %v272, 0.03125
    %v274 = vsub.f32 %v269, %v273
    %v275 = vmul.f32 %v274, %v274
    %v276 = vsel %vm32, %v275, 0.0
    %277 = vadd.xlane.f32.xlu0 %v276
    %v278 = vpop.xlane.xlu0 %277
    %v279 = vmul.f32 %v278, 0.03125
    %280 = vset.pattern.permute.xlu0 6
    %281 = vperm.xlu0 %280, %v45
    %v282 = vpop.permute.xlu0 %281
    %v284 = vmul.f32 %v31, %v282
    %285 = vset.pattern.permute.xlu0 7
    %286 = vperm.xlu0 %285, %v57
    %v287 = vpop.permute.xlu0 %286
    %v289 = vadd.f32 %v284, %v287
    %v290 = vmax.f32 %v289, 0.0
    %v291 = vsel %vm32, %v290, 0.0
    %292 = vadd.xlane.f32.xlu0 %v291
    %v293 = vpop.xlane.xlu0 %292
    %v294 = vmul.f32 %v293, 0.03125
    %v295 = vsub.f32 %v290, %v294
    %v296 = vmul.f32 %v295, %v295
    %v297 = vsel %vm32, %v296, 0.0
    %298 = vadd.xlane.f32.xlu0 %v297
    %v299 = vpop.xlane.xlu0 %298
    %v300 = vmul.f32 %v299, 0.03125
    %v301 = vmul.f32 %v18, %v300
    %v302 = vadd.f32 %v301, 1e-05
    %v303 = vrsqrt.pop %v302
    %305 = vrot.lane.b32.xlu0 %v303, 127
    %v306 = vpop.permute.xlu0 %305
    %v308 = vmul.f32 %v18, %v306
    %310 = vset.pattern.permute.xlu0 8
    %311 = vperm.xlu0 %310, %v308
    %v312 = vpop.permute.xlu0 %311
    %v314 = vmul.f32 %v295, %v312
    %315 = vset.pattern.permute.xlu0 10
    %316 = vperm.xlu0 %315, %v18
    %v317 = vpop.permute.xlu0 %316
    %v319 = vadd.f32 %v314, %v317
    %v320 = vmax.f32 %v319, 0.0
    %v321 = vadd.f32 %v279, 1e-05
    %v322 = vrsqrt.pop %v321
    %v324 = vrot.slane %v322, 4
    %v326 = vmul.f32 %v18, %v324
    %328 = vset.pattern.permute.xlu0 6
    %329 = vperm.xlu0 %328, %v326
    %v330 = vpop.permute.xlu0 %329
    %v331 = vrot.slane %v330, 4
    %v333 = vmul.f32 %v269, %v331
    %v335 = vrot.slane %v273, 4
    %v337 = vmul.f32 %v326, %v335
    %339 = vrot.lane.b32.xlu0 %v337, 1
    %v340 = vpop.permute.xlu0 %339
    %v342 = vsub.f32 %v18, %v340
    %344 = vset.pattern.permute.xlu0 7
    %345 = vperm.xlu0 %344, %v342
    %v346 = vpop.permute.xlu0 %345
    %v347 = vrot.slane %v346, 4
    %v349 = vadd.f32 %v333, %v347
    %v350 = vmax.f32 %v349, 0.0
    %v351 = vsel %vm32, %v350, 0.0
    %352 = vadd.xlane.f32.xlu0 %v351
    %v353 = vpop.xlane.xlu0 %352
    %v354 = vmul.f32 %v353, 0.03125
    %v355 = vsub.f32 %v350, %v354
    %v356 = vmul.f32 %v355, %v355
    %v357 = vsel %vm32, %v356, 0.0
    %358 = vadd.xlane.f32.xlu0 %v357
    %v359 = vpop.xlane.xlu0 %358
    %v360 = vmul.f32 %v359, 0.03125
    %v362 = vrot.slane %v360, 4
    %v364 = vmul.f32 %v18, %v362
    %v365 = vadd.f32 %v364, 1e-05
    %v366 = vrsqrt.pop %v365
    %368 = vrot.lane.b32.xlu0 %v366, 127
    %v369 = vpop.permute.xlu0 %368
    %v371 = vmul.f32 %v18, %v369
    %373 = vset.pattern.permute.xlu0 8
    %374 = vperm.xlu0 %373, %v371
    %v375 = vpop.permute.xlu0 %374
    %v376 = vrot.slane %v375, 4
    %v378 = vmul.f32 %v355, %v376
    %v379 = vrot.slane %v317, 4
    %v381 = vadd.f32 %v378, %v379
    %v382 = vmax.f32 %v381, 0.0
    %v385 = vrot.slane %v22, 4
    %v386 = vrot.slane %v23, 4
    %v387 = vsel %vm106, %v385, %v386
    %v388 = vrot.slane %v24, 4
    %v389 = vsel %vm106, %v386, %v388
    %390 = vrot.lane.b32.xlu0 %v387, 124
    %v391 = vpop.permute.xlu0 %390
    %392 = vrot.lane.b32.xlu0 %v389, 124
    %v393 = vpop.permute.xlu0 %392
    %394 = vrot.lane.b32.xlu0 %v388, 124
    %v395 = vpop.permute.xlu0 %394
    %v396 = vsel %vm96, %v391, 0
    %v398 = vsel %vm96, %v393, 0
    %v400 = vsel %vm96, %v395, 0
    %v403 = vsel %vm106, %v382, 0
    %405 = vmatprep.subr.mxu0 0.0
    %406 = vmatpush1.msra.mxu0 0.0
    %407 = vmatprep.subr.mxu0 0.0
    %408 = vmatpush1.msra.mxu0 0.0
    %409 = vmatprep.subr.mxu0 0.0
    %410 = vmatpush1.msra.mxu0 0.0
    %411 = vmatprep.subr.mxu0 0.0
    %412 = vmatpush1.msra.mxu0 0.0
    %413 = vmatprep.subr.mxu0 0.0
    %414 = vmatpush1.msra.mxu0 0.0
    %415 = vmatprep.subr.mxu0 0.0
    %416 = vmatpush1.msra.mxu0 0.0
    %417 = vmatprep.subr.mxu0 0.0
    %418 = vmatpush1.msra.mxu0 0.0
    %419 = vmatprep.subr.mxu0 0.0
    %420 = vmatpush1.msra.mxu0 0.0
    %421 = vmatprep.subr.mxu0 0.0
    %422 = vmatpush1.msra.mxu0 0.0
    %423 = vmatprep.subr.mxu0 0.0
    %424 = vmatpush1.msra.mxu0 0.0
    %425 = vmatprep.subr.mxu0 0.0
    %426 = vmatpush1.msra.mxu0 0.0
    %427 = vmatprep.subr.mxu0 0.0
    %428 = vmatpush1.msra.mxu0 0.0
    %429 = vmatprep.subr.mxu0 0.0
    %430 = vmatpush1.msra.mxu0 0.0
    %431 = vmatprep.subr.mxu0 0.0
    %432 = vmatpush1.msra.mxu0 0.0
    %433 = vmatprep.subr.mxu0 0.0
    %434 = vmatpush1.msra.mxu0 0.0
    %435 = vmatprep.subr.mxu0 0.0
    %436 = vmatpush1.msra.mxu0 %v403
    %437 = vmatprep.subr.mxu0 0.0
    %438 = vmatpush2.msra.mxu0 0.0
    %439 = vmatprep.subr.mxu0 0.0
    %440 = vmatpush2.msra.mxu0 0.0
    %441 = vmatprep.subr.mxu0 0.0
    %442 = vmatpush2.msra.mxu0 0.0
    %443 = vmatprep.subr.mxu0 0.0
    %444 = vmatpush2.msra.mxu0 0.0
    %445 = vmatprep.subr.mxu0 0.0
    %446 = vmatpush2.msra.mxu0 0.0
    %447 = vmatprep.subr.mxu0 0.0
    %448 = vmatpush2.msra.mxu0 0.0
    %449 = vmatprep.subr.mxu0 0.0
    %450 = vmatpush2.msra.mxu0 0.0
    %451 = vmatprep.subr.mxu0 0.0
    %452 = vmatpush2.msra.mxu0 0.0
    %453 = vmatprep.subr.mxu0 0.0
    %454 = vmatpush2.msra.mxu0 0.0
    %455 = vmatprep.subr.mxu0 0.0
    %456 = vmatpush2.msra.mxu0 0.0
    %457 = vmatprep.subr.mxu0 0.0
    %458 = vmatpush2.msra.mxu0 0.0
    %459 = vmatprep.subr.mxu0 0.0
    %460 = vmatpush2.msra.mxu0 0.0
    %461 = vmatprep.subr.mxu0 0.0
    %462 = vmatpush2.msra.mxu0 0.0
    %463 = vmatprep.subr.mxu0 0.0
    %464 = vmatpush2.msra.mxu0 0.0
    %465 = vmatprep.subr.mxu0 0.0
    %466 = vmatpush2.msra.mxu0 0.0
    %467 = vmatprep.subr.mxu0 0.0
    %468 = vmatpush2.msra.mxu0 0.0
    %469 = vmatprep.mubr.f32.mxu0 0.0
    %470 = vmatmul.mubr.f32.gmra.mxu0 %v396
    %v471 = vpop.f32.mrf.mxu0
    %v472 = vadd.f32 0.0, %v471
    %v473 = vpop.f32.mrf.mxu0
    %474 = vmatprep.mubr.f32.mxu0 0.0
    %475 = vmatmul.mubr.f32.gmra.mxu0 %v398
    %v476 = vpop.f32.mrf.mxu0
    %v477 = vadd.f32 0.0, %v476
    %v478 = vpop.f32.mrf.mxu0
    %479 = vmatprep.mubr.f32.mxu0 0.0
    %480 = vmatmul.mubr.f32.gmra.mxu0 %v400
    %v481 = vpop.f32.mrf.mxu0
    %v482 = vadd.f32 0.0, %v481
    %v483 = vpop.f32.mrf.mxu0
    %484 = vdwg.mxu0
    %v485 = vsel %vm96, %v387, 0
    %v487 = vsel %vm96, %v389, 0
    %v489 = vsel %vm96, %v388, 0
    %v492 = vsel %vm106, %v320, 0
    %494 = vmatprep.subr.mxu0 0.0
    %495 = vmatpush1.msra.mxu0 0.0
    %496 = vmatprep.subr.mxu0 0.0
    %497 = vmatpush1.msra.mxu0 0.0
    %498 = vmatprep.subr.mxu0 0.0
    %499 = vmatpush1.msra.mxu0 0.0
    %500 = vmatprep.subr.mxu0 0.0
    %501 = vmatpush1.msra.mxu0 0.0
    %502 = vmatprep.subr.mxu0 0.0
    %503 = vmatpush1.msra.mxu0 0.0
    %504 = vmatprep.subr.mxu0 0.0
    %505 = vmatpush1.msra.mxu0 0.0
    %506 = vmatprep.subr.mxu0 0.0
    %507 = vmatpush1.msra.mxu0 0.0
    %508 = vmatprep.subr.mxu0 0.0
    %509 = vmatpush1.msra.mxu0 0.0
    %510 = vmatprep.subr.mxu0 0.0
    %511 = vmatpush1.msra.mxu0 0.0
    %512 = vmatprep.subr.mxu0 0.0
    %513 = vmatpush1.msra.mxu0 0.0
    %514 = vmatprep.subr.mxu0 0.0
    %515 = vmatpush1.msra.mxu0 0.0
    %516 = vmatprep.subr.mxu0 0.0
    %517 = vmatpush1.msra.mxu0 0.0
    %518 = vmatprep.subr.mxu0 0.0
    %519 = vmatpush1.msra.mxu0 0.0
    %520 = vmatprep.subr.mxu0 0.0
    %521 = vmatpush1.msra.mxu0 0.0
    %522 = vmatprep.subr.mxu0 0.0
    %523 = vmatpush1.msra.mxu0 0.0
    %524 = vmatprep.subr.mxu0 0.0
    %525 = vmatpush1.msra.mxu0 %v492
    %526 = vmatprep.subr.mxu0 0.0
    %527 = vmatpush2.msra.mxu0 0.0
    %528 = vmatprep.subr.mxu0 0.0
    %529 = vmatpush2.msra.mxu0 0.0
    %530 = vmatprep.subr.mxu0 0.0
    %531 = vmatpush2.msra.mxu0 0.0
    %532 = vmatprep.subr.mxu0 0.0
    %533 = vmatpush2.msra.mxu0 0.0
    %534 = vmatprep.subr.mxu0 0.0
    %535 = vmatpush2.msra.mxu0 0.0
    %536 = vmatprep.subr.mxu0 0.0
    %537 = vmatpush2.msra.mxu0 0.0
    %538 = vmatprep.subr.mxu0 0.0
    %539 = vmatpush2.msra.mxu0 0.0
    %540 = vmatprep.subr.mxu0 0.0
    %541 = vmatpush2.msra.mxu0 0.0
    %542 = vmatprep.subr.mxu0 0.0
    %543 = vmatpush2.msra.mxu0 0.0
    %544 = vmatprep.subr.mxu0 0.0
    %545 = vmatpush2.msra.mxu0 0.0
    %546 = vmatprep.subr.mxu0 0.0
    %547 = vmatpush2.msra.mxu0 0.0
    %548 = vmatprep.subr.mxu0 0.0
    %549 = vmatpush2.msra.mxu0 0.0
    %550 = vmatprep.subr.mxu0 0.0
    %551 = vmatpush2.msra.mxu0 0.0
    %552 = vmatprep.subr.mxu0 0.0
    %553 = vmatpush2.msra.mxu0 0.0
    %554 = vmatprep.subr.mxu0 0.0
    %555 = vmatpush2.msra.mxu0 0.0
    %556 = vmatprep.subr.mxu0 0.0
    %557 = vmatpush2.msra.mxu0 0.0
    %558 = vmatprep.mubr.f32.mxu0 0.0
    %559 = vmatmul.mubr.f32.gmra.mxu0 %v485
    %v560 = vpop.f32.mrf.mxu0
    %v561 = vadd.f32 %v472, %v560
    %v562 = vpop.f32.mrf.mxu0
    %563 = vmatprep.mubr.f32.mxu0 0.0
    %564 = vmatmul.mubr.f32.gmra.mxu0 %v487
    %v565 = vpop.f32.mrf.mxu0
    %v566 = vadd.f32 %v477, %v565
    %v567 = vpop.f32.mrf.mxu0
    %568 = vmatprep.mubr.f32.mxu0 0.0
    %569 = vmatmul.mubr.f32.gmra.mxu0 %v489
    %v570 = vpop.f32.mrf.mxu0
    %v571 = vadd.f32 %v482, %v570
    %v572 = vpop.f32.mrf.mxu0
    %573 = vdwg.mxu0
    %577 = vrot.lane.b32.xlu0 %v561, 2
    %v578 = vpop.permute.xlu0 %577
    %579 = vrot.lane.b32.xlu0 %v566, 2
    %v580 = vpop.permute.xlu0 %579
    %581 = vrot.lane.b32.xlu0 %v571, 2
    %v582 = vpop.permute.xlu0 %581
    %v586 = vsel %vm202, 0.0, %v578
    %v587 = vsel %vm202, 0.0, %v580
    %v588 = vsel %vm202, 0.0, %v582
    %v589 = vsel %vm206, %v586, 0.0
    %v590 = vsel %vm206, %v587, 0.0
    %v591 = vsel %vm206, %v588, 0.0
    %v592 = vmul.f32 %v589, %v213
    %v593 = vadd.f32 %v592, 0.0
    %v594 = vmul.f32 %v589, %v222
    %v596 = vrot.slane %v594, 4
    %597 = vrot.lane.b32.xlu0 %v596, 127
    %v598 = vpop.permute.xlu0 %597
    %v600 = vadd.f32 %v593, %v598
    %602 = vrot.lane.b32.xlu0 %v590, 126
    %v603 = vpop.permute.xlu0 %602
    %v605 = vadd.f32 %v600, %v603
    %v606 = vmul.f32 %v590, %v242
    %v608 = vrot.slane %v606, 4
    %609 = vrot.lane.b32.xlu0 %v608, 125
    %v610 = vpop.permute.xlu0 %609
    %v612 = vadd.f32 %v605, %v610
    %v613 = vmul.f32 %v591, %v257
    %615 = vrot.lane.b32.xlu0 %v613, 124
    %v616 = vpop.permute.xlu0 %615
    %v618 = vadd.f32 %v612, %v616
    %619 = vset.pattern.permute.xlu0 11
    %620 = vperm.xlu0 %619, %v18
    %v621 = vpop.permute.xlu0 %620
    %v623 = vadd.f32 %v618, %v621
    %v624 = vsel %vm32, %v623, 0.0
    %625 = vadd.xlane.f32.xlu0 %v624
    %v626 = vpop.xlane.xlu0 %625
    %v627 = vmul.f32 %v626, 0.03125
    %v628 = vsub.f32 %v623, %v627
    %v629 = vmul.f32 %v628, %v628
    %v630 = vsel %vm32, %v629, 0.0
    %631 = vadd.xlane.f32.xlu0 %v630
    %v632 = vpop.xlane.xlu0 %631
    %v633 = vmul.f32 %v632, 0.03125
    %634 = vset.pattern.permute.xlu0 12
    %635 = vperm.xlu0 %634, %v45
    %v636 = vpop.permute.xlu0 %635
    %v638 = vmul.f32 %v31, %v636
    %639 = vset.pattern.permute.xlu0 13
    %640 = vperm.xlu0 %639, %v57
    %v641 = vpop.permute.xlu0 %640
    %v643 = vadd.f32 %v638, %v641
    %v644 = vmax.f32 %v643, 0.0
    %v645 = vsel %vm32, %v644, 0.0
    %646 = vadd.xlane.f32.xlu0 %v645
    %v647 = vpop.xlane.xlu0 %646
    %v648 = vmul.f32 %v647, 0.03125
    %v649 = vsub.f32 %v644, %v648
    %v650 = vmul.f32 %v649, %v649
    %v651 = vsel %vm32, %v650, 0.0
    %652 = vadd.xlane.f32.xlu0 %v651
    %v653 = vpop.xlane.xlu0 %652
    %v654 = vmul.f32 %v653, 0.03125
    %v655 = vmul.f32 %v18, %v654
    %v656 = vadd.f32 %v655, 1e-05
    %v657 = vrsqrt.pop %v656
    %659 = vrot.lane.b32.xlu0 %v657, 127
    %v660 = vpop.permute.xlu0 %659
    %v662 = vmul.f32 %v18, %v660
    %664 = vset.pattern.permute.xlu0 14
    %665 = vperm.xlu0 %664, %v662
    %v666 = vpop.permute.xlu0 %665
    %v668 = vmul.f32 %v649, %v666
    %669 = vset.pattern.permute.xlu0 16
    %670 = vperm.xlu0 %669, %v18
    %v671 = vpop.permute.xlu0 %670
    %v673 = vadd.f32 %v668, %v671
    %v674 = vmax.f32 %v673, 0.0
    %675 = vset.pattern.permute.xlu0 12
    %676 = vperm.xlu0 %675, %v326
    %v677 = vpop.permute.xlu0 %676
    %v678 = vrot.slane %v677, 4
    %v680 = vmul.f32 %v269, %v678
    %681 = vset.pattern.permute.xlu0 13
    %682 = vperm.xlu0 %681, %v342
    %v683 = vpop.permute.xlu0 %682
    %v684 = vrot.slane %v683, 4
    %v686 = vadd.f32 %v680, %v684
    %v687 = vmax.f32 %v686, 0.0
    %v688 = vsel %vm32, %v687, 0.0
    %689 = vadd.xlane.f32.xlu0 %v688
    %v690 = vpop.xlane.xlu0 %689
    %v691 = vmul.f32 %v690, 0.03125
    %v692 = vsub.f32 %v687, %v691
    %v693 = vmul.f32 %v692, %v692
    %v694 = vsel %vm32, %v693, 0.0
    %695 = vadd.xlane.f32.xlu0 %v694
    %v696 = vpop.xlane.xlu0 %695
    %v697 = vmul.f32 %v696, 0.03125
    %v699 = vrot.slane %v697, 4
    %v701 = vmul.f32 %v18, %v699
    %v702 = vadd.f32 %v701, 1e-05
    %v703 = vrsqrt.pop %v702
    %705 = vrot.lane.b32.xlu0 %v703, 127
    %v706 = vpop.permute.xlu0 %705
    %v708 = vmul.f32 %v18, %v706
    %710 = vset.pattern.permute.xlu0 14
    %711 = vperm.xlu0 %710, %v708
    %v712 = vpop.permute.xlu0 %711
    %v713 = vrot.slane %v712, 4
    %v715 = vmul.f32 %v692, %v713
    %v716 = vrot.slane %v671, 4
    %v718 = vadd.f32 %v715, %v716
    %v719 = vmax.f32 %v718, 0.0
    %723 = vrot.lane.b32.xlu0 %v25, 124
    %v724 = vpop.permute.xlu0 %723
    %725 = vrot.lane.b32.xlu0 %v26, 124
    %v726 = vpop.permute.xlu0 %725
    %727 = vrot.lane.b32.xlu0 %v27, 124
    %v728 = vpop.permute.xlu0 %727
    %v729 = vsel %vm96, %v724, 0
    %v731 = vsel %vm96, %v726, 0
    %v733 = vsel %vm96, %v728, 0
    %v736 = vsel %vm106, %v719, 0
    %738 = vmatprep.subr.mxu0 0.0
    %739 = vmatpush1.msra.mxu0 0.0
    %740 = vmatprep.subr.mxu0 0.0
    %741 = vmatpush1.msra.mxu0 0.0
    %742 = vmatprep.subr.mxu0 0.0
    %743 = vmatpush1.msra.mxu0 0.0
    %744 = vmatprep.subr.mxu0 0.0
    %745 = vmatpush1.msra.mxu0 0.0
    %746 = vmatprep.subr.mxu0 0.0
    %747 = vmatpush1.msra.mxu0 0.0
    %748 = vmatprep.subr.mxu0 0.0
    %749 = vmatpush1.msra.mxu0 0.0
    %750 = vmatprep.subr.mxu0 0.0
    %751 = vmatpush1.msra.mxu0 0.0
    %752 = vmatprep.subr.mxu0 0.0
    %753 = vmatpush1.msra.mxu0 0.0
    %754 = vmatprep.subr.mxu0 0.0
    %755 = vmatpush1.msra.mxu0 0.0
    %756 = vmatprep.subr.mxu0 0.0
    %757 = vmatpush1.msra.mxu0 0.0
    %758 = vmatprep.subr.mxu0 0.0
    %759 = vmatpush1.msra.mxu0 0.0
    %760 = vmatprep.subr.mxu0 0.0
    %761 = vmatpush1.msra.mxu0 0.0
    %762 = vmatprep.subr.mxu0 0.0
    %763 = vmatpush1.msra.mxu0 0.0
    %764 = vmatprep.subr.mxu0 0.0
    %765 = vmatpush1.msra.mxu0 0.0
    %766 = vmatprep.subr.mxu0 0.0
    %767 = vmatpush1.msra.mxu0 0.0
    %768 = vmatprep.subr.mxu0 0.0
    %769 = vmatpush1.msra.mxu0 %v736
    %770 = vmatprep.subr.mxu0 0.0
    %771 = vmatpush2.msra.mxu0 0.0
    %772 = vmatprep.subr.mxu0 0.0
    %773 = vmatpush2.msra.mxu0 0.0
    %774 = vmatprep.subr.mxu0 0.0
    %775 = vmatpush2.msra.mxu0 0.0
    %776 = vmatprep.subr.mxu0 0.0
    %777 = vmatpush2.msra.mxu0 0.0
    %778 = vmatprep.subr.mxu0 0.0
    %779 = vmatpush2.msra.mxu0 0.0
    %780 = vmatprep.subr.mxu0 0.0
    %781 = vmatpush2.msra.mxu0 0.0
    %782 = vmatprep.subr.mxu0 0.0
    %783 = vmatpush2.msra.mxu0 0.0
    %784 = vmatprep.subr.mxu0 0.0
    %785 = vmatpush2.msra.mxu0 0.0
    %786 = vmatprep.subr.mxu0 0.0
    %787 = vmatpush2.msra.mxu0 0.0
    %788 = vmatprep.subr.mxu0 0.0
    %789 = vmatpush2.msra.mxu0 0.0
    %790 = vmatprep.subr.mxu0 0.0
    %791 = vmatpush2.msra.mxu0 0.0
    %792 = vmatprep.subr.mxu0 0.0
    %793 = vmatpush2.msra.mxu0 0.0
    %794 = vmatprep.subr.mxu0 0.0
    %795 = vmatpush2.msra.mxu0 0.0
    %796 = vmatprep.subr.mxu0 0.0
    %797 = vmatpush2.msra.mxu0 0.0
    %798 = vmatprep.subr.mxu0 0.0
    %799 = vmatpush2.msra.mxu0 0.0
    %800 = vmatprep.subr.mxu0 0.0
    %801 = vmatpush2.msra.mxu0 0.0
    %802 = vmatprep.mubr.f32.mxu0 0.0
    %803 = vmatmul.mubr.f32.gmra.mxu0 %v729
    %v804 = vpop.f32.mrf.mxu0
    %v805 = vadd.f32 0.0, %v804
    %v806 = vpop.f32.mrf.mxu0
    %807 = vmatprep.mubr.f32.mxu0 0.0
    %808 = vmatmul.mubr.f32.gmra.mxu0 %v731
    %v809 = vpop.f32.mrf.mxu0
    %v810 = vadd.f32 0.0, %v809
    %v811 = vpop.f32.mrf.mxu0
    %812 = vmatprep.mubr.f32.mxu0 0.0
    %813 = vmatmul.mubr.f32.gmra.mxu0 %v733
    %v814 = vpop.f32.mrf.mxu0
    %v815 = vadd.f32 0.0, %v814
    %v816 = vpop.f32.mrf.mxu0
    %817 = vdwg.mxu0
    %v818 = vsel %vm96, %v25, 0
    %v820 = vsel %vm96, %v26, 0
    %v822 = vsel %vm96, %v27, 0
    %v825 = vsel %vm106, %v674, 0
    %827 = vmatprep.subr.mxu0 0.0
    %828 = vmatpush1.msra.mxu0 0.0
    %829 = vmatprep.subr.mxu0 0.0
    %830 = vmatpush1.msra.mxu0 0.0
    %831 = vmatprep.subr.mxu0 0.0
    %832 = vmatpush1.msra.mxu0 0.0
    %833 = vmatprep.subr.mxu0 0.0
    %834 = vmatpush1.msra.mxu0 0.0
    %835 = vmatprep.subr.mxu0 0.0
    %836 = vmatpush1.msra.mxu0 0.0
    %837 = vmatprep.subr.mxu0 0.0
    %838 = vmatpush1.msra.mxu0 0.0
    %839 = vmatprep.subr.mxu0 0.0
    %840 = vmatpush1.msra.mxu0 0.0
    %841 = vmatprep.subr.mxu0 0.0
    %842 = vmatpush1.msra.mxu0 0.0
    %843 = vmatprep.subr.mxu0 0.0
    %844 = vmatpush1.msra.mxu0 0.0
    %845 = vmatprep.subr.mxu0 0.0
    %846 = vmatpush1.msra.mxu0 0.0
    %847 = vmatprep.subr.mxu0 0.0
    %848 = vmatpush1.msra.mxu0 0.0
    %849 = vmatprep.subr.mxu0 0.0
    %850 = vmatpush1.msra.mxu0 0.0
    %851 = vmatprep.subr.mxu0 0.0
    %852 = vmatpush1.msra.mxu0 0.0
    %853 = vmatprep.subr.mxu0 0.0
    %854 = vmatpush1.msra.mxu0 0.0
    %855 = vmatprep.subr.mxu0 0.0
    %856 = vmatpush1.msra.mxu0 0.0
    %857 = vmatprep.subr.mxu0 0.0
    %858 = vmatpush1.msra.mxu0 %v825
    %859 = vmatprep.subr.mxu0 0.0
    %860 = vmatpush2.msra.mxu0 0.0
    %861 = vmatprep.subr.mxu0 0.0
    %862 = vmatpush2.msra.mxu0 0.0
    %863 = vmatprep.subr.mxu0 0.0
    %864 = vmatpush2.msra.mxu0 0.0
    %865 = vmatprep.subr.mxu0 0.0
    %866 = vmatpush2.msra.mxu0 0.0
    %867 = vmatprep.subr.mxu0 0.0
    %868 = vmatpush2.msra.mxu0 0.0
    %869 = vmatprep.subr.mxu0 0.0
    %870 = vmatpush2.msra.mxu0 0.0
    %871 = vmatprep.subr.mxu0 0.0
    %872 = vmatpush2.msra.mxu0 0.0
    %873 = vmatprep.subr.mxu0 0.0
    %874 = vmatpush2.msra.mxu0 0.0
    %875 = vmatprep.subr.mxu0 0.0
    %876 = vmatpush2.msra.mxu0 0.0
    %877 = vmatprep.subr.mxu0 0.0
    %878 = vmatpush2.msra.mxu0 0.0
    %879 = vmatprep.subr.mxu0 0.0
    %880 = vmatpush2.msra.mxu0 0.0
    %881 = vmatprep.subr.mxu0 0.0
    %882 = vmatpush2.msra.mxu0 0.0
    %883 = vmatprep.subr.mxu0 0.0
    %884 = vmatpush2.msra.mxu0 0.0
    %885 = vmatprep.subr.mxu0 0.0
    %886 = vmatpush2.msra.mxu0 0.0
    %887 = vmatprep.subr.mxu0 0.0
    %888 = vmatpush2.msra.mxu0 0.0
    %889 = vmatprep.subr.mxu0 0.0
    %890 = vmatpush2.msra.mxu0 0.0
    %891 = vmatprep.mubr.f32.mxu0 0.0
    %892 = vmatmul.mubr.f32.gmra.mxu0 %v818
    %v893 = vpop.f32.mrf.mxu0
    %v894 = vadd.f32 %v805, %v893
    %v895 = vpop.f32.mrf.mxu0
    %896 = vmatprep.mubr.f32.mxu0 0.0
    %897 = vmatmul.mubr.f32.gmra.mxu0 %v820
    %v898 = vpop.f32.mrf.mxu0
    %v899 = vadd.f32 %v810, %v898
    %v900 = vpop.f32.mrf.mxu0
    %901 = vmatprep.mubr.f32.mxu0 0.0
    %902 = vmatmul.mubr.f32.gmra.mxu0 %v822
    %v903 = vpop.f32.mrf.mxu0
    %v904 = vadd.f32 %v815, %v903
    %v905 = vpop.f32.mrf.mxu0
    %906 = vdwg.mxu0
    %v907 = vadd.f32 %v633, 1e-05
    %v908 = vrsqrt.pop %v907
    %v909 = vmul.f32 %v19, %v908
    %911 = vset.pattern.permute.xlu0 12
    %912 = vperm.xlu0 %911, %v909
    %v913 = vpop.permute.xlu0 %912
    %v915 = vmul.f32 %v623, %v913
    %v916 = vmul.f32 %v909, %v627
    %918 = vrot.lane.b32.xlu0 %v916, 1
    %v919 = vpop.permute.xlu0 %918
    %v921 = vsub.f32 %v19, %v919
    %923 = vset.pattern.permute.xlu0 13
    %924 = vperm.xlu0 %923, %v921
    %v925 = vpop.permute.xlu0 %924
    %v927 = vadd.f32 %v915, %v925
    %v928 = vmax.f32 %v927, 0.0
    %v929 = vsel %vm32, %v928, 0.0
    %930 = vadd.xlane.f32.xlu0 %v929
    %v931 = vpop.xlane.xlu0 %930
    %v932 = vmul.f32 %v931, 0.03125
    %v933 = vsub.f32 %v928, %v932
    %v934 = vmul.f32 %v933, %v933
    %v935 = vsel %vm32, %v934, 0.0
    %936 = vadd.xlane.f32.xlu0 %v935
    %v937 = vpop.xlane.xlu0 %936
    %v938 = vmul.f32 %v937, 0.03125
    %v939 = vmul.f32 %v19, %v938
    %v940 = vadd.f32 %v939, 1e-05
    %v941 = vrsqrt.pop %v940
    %943 = vrot.lane.b32.xlu0 %v941, 127
    %v944 = vpop.permute.xlu0 %943
    %v946 = vmul.f32 %v19, %v944
    %948 = vset.pattern.permute.xlu0 14
    %949 = vperm.xlu0 %948, %v946
    %v950 = vpop.permute.xlu0 %949
    %v952 = vmul.f32 %v933, %v950
    %954 = vset.pattern.permute.xlu0 16
    %955 = vperm.xlu0 %954, %v19
    %v956 = vpop.permute.xlu0 %955
    %v958 = vadd.f32 %v952, %v956
    %v959 = vmax.f32 %v958, 0.0
    %960 = vrot.lane.b32.xlu0 %v25, 120
    %v961 = vpop.permute.xlu0 %960
    %962 = vrot.lane.b32.xlu0 %v26, 120
    %v963 = vpop.permute.xlu0 %962
    %964 = vrot.lane.b32.xlu0 %v27, 120
    %v965 = vpop.permute.xlu0 %964
    %v966 = vsel %vm96, %v961, 0
    %v968 = vsel %vm96, %v963, 0
    %v970 = vsel %vm96, %v965, 0
    %v973 = vsel %vm106, %v959, 0
    %975 = vmatprep.subr.mxu0 0.0
    %976 = vmatpush1.msra.mxu0 0.0
    %977 = vmatprep.subr.mxu0 0.0
    %978 = vmatpush1.msra.mxu0 0.0
    %979 = vmatprep.subr.mxu0 0.0
    %980 = vmatpush1.msra.mxu0 0.0
    %981 = vmatprep.subr.mxu0 0.0
    %982 = vmatpush1.msra.mxu0 0.0
    %983 = vmatprep.subr.mxu0 0.0
    %984 = vmatpush1.msra.mxu0 0.0
    %985 = vmatprep.subr.mxu0 0.0
    %986 = vmatpush1.msra.mxu0 0.0
    %987 = vmatprep.subr.mxu0 0.0
    %988 = vmatpush1.msra.mxu0 0.0
    %989 = vmatprep.subr.mxu0 0.0
    %990 = vmatpush1.msra.mxu0 0.0
    %991 = vmatprep.subr.mxu0 0.0
    %992 = vmatpush1.msra.mxu0 0.0
    %993 = vmatprep.subr.mxu0 0.0
    %994 = vmatpush1.msra.mxu0 0.0
    %995 = vmatprep.subr.mxu0 0.0
    %996 = vmatpush1.msra.mxu0 0.0
    %997 = vmatprep.subr.mxu0 0.0
    %998 = vmatpush1.msra.mxu0 0.0
    %999 = vmatprep.subr.mxu0 0.0
    %1000 = vmatpush1.msra.mxu0 0.0
    %1001 = vmatprep.subr.mxu0 0.0
    %1002 = vmatpush1.msra.mxu0 0.0
    %1003 = vmatprep.subr.mxu0 0.0
    %1004 = vmatpush1.msra.mxu0 0.0
    %1005 = vmatprep.subr.mxu0 0.0
    %1006 = vmatpush1.msra.mxu0 %v973
    %1007 = vmatprep.subr.mxu0 0.0
    %1008 = vmatpush2.msra.mxu0 0.0
    %1009 = vmatprep.subr.mxu0 0.0
    %1010 = vmatpush2.msra.mxu0 0.0
    %1011 = vmatprep.subr.mxu0 0.0
    %1012 = vmatpush2.msra.mxu0 0.0
    %1013 = vmatprep.subr.mxu0 0.0
    %1014 = vmatpush2.msra.mxu0 0.0
    %1015 = vmatprep.subr.mxu0 0.0
    %1016 = vmatpush2.msra.mxu0 0.0
    %1017 = vmatprep.subr.mxu0 0.0
    %1018 = vmatpush2.msra.mxu0 0.0
    %1019 = vmatprep.subr.mxu0 0.0
    %1020 = vmatpush2.msra.mxu0 0.0
    %1021 = vmatprep.subr.mxu0 0.0
    %1022 = vmatpush2.msra.mxu0 0.0
    %1023 = vmatprep.subr.mxu0 0.0
    %1024 = vmatpush2.msra.mxu0 0.0
    %1025 = vmatprep.subr.mxu0 0.0
    %1026 = vmatpush2.msra.mxu0 0.0
    %1027 = vmatprep.subr.mxu0 0.0
    %1028 = vmatpush2.msra.mxu0 0.0
    %1029 = vmatprep.subr.mxu0 0.0
    %1030 = vmatpush2.msra.mxu0 0.0
    %1031 = vmatprep.subr.mxu0 0.0
    %1032 = vmatpush2.msra.mxu0 0.0
    %1033 = vmatprep.subr.mxu0 0.0
    %1034 = vmatpush2.msra.mxu0 0.0
    %1035 = vmatprep.subr.mxu0 0.0
    %1036 = vmatpush2.msra.mxu0 0.0
    %1037 = vmatprep.subr.mxu0 0.0
    %1038 = vmatpush2.msra.mxu0 0.0
    %1039 = vmatprep.mubr.f32.mxu0 0.0
    %1040 = vmatmul.mubr.f32.gmra.mxu0 %v966
    %v1041 = vpop.f32.mrf.mxu0
    %v1042 = vadd.f32 0.0, %v1041
    %v1043 = vpop.f32.mrf.mxu0
    %1044 = vmatprep.mubr.f32.mxu0 0.0
    %1045 = vmatmul.mubr.f32.gmra.mxu0 %v968
    %v1046 = vpop.f32.mrf.mxu0
    %v1047 = vadd.f32 0.0, %v1046
    %v1048 = vpop.f32.mrf.mxu0
    %1049 = vmatprep.mubr.f32.mxu0 0.0
    %1050 = vmatmul.mubr.f32.gmra.mxu0 %v970
    %v1051 = vpop.f32.mrf.mxu0
    %v1052 = vadd.f32 0.0, %v1051
    %v1053 = vpop.f32.mrf.mxu0
    %1054 = vdwg.mxu0
    %v1055 = vadd.f32 %v894, %v1042
    %v1056 = vadd.f32 %v899, %v1047
    %v1057 = vadd.f32 %v904, %v1052
    %1061 = vrot.lane.b32.xlu0 %v1055, 2
    %v1062 = vpop.permute.xlu0 %1061
    %1063 = vrot.lane.b32.xlu0 %v1056, 2
    %v1064 = vpop.permute.xlu0 %1063
    %1065 = vrot.lane.b32.xlu0 %v1057, 2
    %v1066 = vpop.permute.xlu0 %1065
    %v1070 = vsel %vm202, 0.0, %v1062
    %v1071 = vsel %vm202, 0.0, %v1064
    %v1072 = vsel %vm202, 0.0, %v1066
    %v1073 = vsel %vm206, %v1070, 0.0
    %v1074 = vsel %vm206, %v1071, 0.0
    %v1075 = vsel %vm206, %v1072, 0.0
    %v1076 = vmul.f32 %v1073, %v213
    %v1077 = vadd.f32 %v1076, 0.0
    %v1078 = vmul.f32 %v1073, %v222
    %v1080 = vrot.slane %v1078, 4
    %1081 = vrot.lane.b32.xlu0 %v1080, 127
    %v1082 = vpop.permute.xlu0 %1081
    %v1084 = vadd.f32 %v1077, %v1082
    %1086 = vrot.lane.b32.xlu0 %v1074, 126
    %v1087 = vpop.permute.xlu0 %1086
    %v1089 = vadd.f32 %v1084, %v1087
    %v1090 = vmul.f32 %v1074, %v242
    %v1092 = vrot.slane %v1090, 4
    %1093 = vrot.lane.b32.xlu0 %v1092, 125
    %v1094 = vpop.permute.xlu0 %1093
    %v1096 = vadd.f32 %v1089, %v1094
    %v1097 = vmul.f32 %v1075, %v257
    %1099 = vrot.lane.b32.xlu0 %v1097, 124
    %v1100 = vpop.permute.xlu0 %1099
    %v1102 = vadd.f32 %v1096, %v1100
    %1103 = vset.pattern.permute.xlu0 17
    %1104 = vperm.xlu0 %1103, %v18
    %v1105 = vpop.permute.xlu0 %1104
    %v1107 = vadd.f32 %v1102, %v1105
    %v1108 = vsel %vm32, %v1107, 0.0
    %1109 = vadd.xlane.f32.xlu0 %v1108
    %v1110 = vpop.xlane.xlu0 %1109
    %v1111 = vmul.f32 %v1110, 0.03125
    %v1112 = vsub.f32 %v1107, %v1111
    %v1113 = vmul.f32 %v1112, %v1112
    %v1114 = vsel %vm32, %v1113, 0.0
    %1115 = vadd.xlane.f32.xlu0 %v1114
    %v1116 = vpop.xlane.xlu0 %1115
    %v1117 = vmul.f32 %v1116, 0.03125
    %1118 = vset.pattern.permute.xlu0 18
    %1119 = vperm.xlu0 %1118, %v45
    %v1120 = vpop.permute.xlu0 %1119
    %v1122 = vmul.f32 %v31, %v1120
    %1123 = vset.pattern.permute.xlu0 19
    %1124 = vperm.xlu0 %1123, %v57
    %v1125 = vpop.permute.xlu0 %1124
    %v1127 = vadd.f32 %v1122, %v1125
    %v1128 = vmax.f32 %v1127, 0.0
    %v1129 = vsel %vm32, %v1128, 0.0
    %1130 = vadd.xlane.f32.xlu0 %v1129
    %v1131 = vpop.xlane.xlu0 %1130
    %v1132 = vmul.f32 %v1131, 0.03125
    %v1133 = vsub.f32 %v1128, %v1132
    %v1134 = vmul.f32 %v1133, %v1133
    %v1135 = vsel %vm32, %v1134, 0.0
    %1136 = vadd.xlane.f32.xlu0 %v1135
    %v1137 = vpop.xlane.xlu0 %1136
    %v1138 = vmul.f32 %v1137, 0.03125
    %v1139 = vmul.f32 %v18, %v1138
    %v1140 = vadd.f32 %v1139, 1e-05
    %v1141 = vrsqrt.pop %v1140
    %1143 = vrot.lane.b32.xlu0 %v1141, 127
    %v1144 = vpop.permute.xlu0 %1143
    %v1146 = vmul.f32 %v18, %v1144
    %1148 = vset.pattern.permute.xlu0 20
    %1149 = vperm.xlu0 %1148, %v1146
    %v1150 = vpop.permute.xlu0 %1149
    %v1152 = vmul.f32 %v1133, %v1150
    %1153 = vset.pattern.permute.xlu0 22
    %1154 = vperm.xlu0 %1153, %v18
    %v1155 = vpop.permute.xlu0 %1154
    %v1157 = vadd.f32 %v1152, %v1155
    %v1158 = vmax.f32 %v1157, 0.0
    %1159 = vset.pattern.permute.xlu0 18
    %1160 = vperm.xlu0 %1159, %v326
    %v1161 = vpop.permute.xlu0 %1160
    %v1162 = vrot.slane %v1161, 4
    %v1164 = vmul.f32 %v269, %v1162
    %1165 = vset.pattern.permute.xlu0 19
    %1166 = vperm.xlu0 %1165, %v342
    %v1167 = vpop.permute.xlu0 %1166
    %v1168 = vrot.slane %v1167, 4
    %v1170 = vadd.f32 %v1164, %v1168
    %v1171 = vmax.f32 %v1170, 0.0
    %v1172 = vsel %vm32, %v1171, 0.0
    %1173 = vadd.xlane.f32.xlu0 %v1172
    %v1174 = vpop.xlane.xlu0 %1173
    %v1175 = vmul.f32 %v1174, 0.03125
    %v1176 = vsub.f32 %v1171, %v1175
    %v1177 = vmul.f32 %v1176, %v1176
    %v1178 = vsel %vm32, %v1177, 0.0
    %1179 = vadd.xlane.f32.xlu0 %v1178
    %v1180 = vpop.xlane.xlu0 %1179
    %v1181 = vmul.f32 %v1180, 0.03125
    %v1183 = vrot.slane %v1181, 4
    %v1185 = vmul.f32 %v18, %v1183
    %v1186 = vadd.f32 %v1185, 1e-05
    %v1187 = vrsqrt.pop %v1186
    %1189 = vrot.lane.b32.xlu0 %v1187, 127
    %v1190 = vpop.permute.xlu0 %1189
    %v1192 = vmul.f32 %v18, %v1190
    %1194 = vset.pattern.permute.xlu0 20
    %1195 = vperm.xlu0 %1194, %v1192
    %v1196 = vpop.permute.xlu0 %1195
    %v1197 = vrot.slane %v1196, 4
    %v1199 = vmul.f32 %v1176, %v1197
    %v1200 = vrot.slane %v1155, 4
    %v1202 = vadd.f32 %v1199, %v1200
    %v1203 = vmax.f32 %v1202, 0.0
    %v1206 = vrot.slane %v27, 4
    %v1207 = vrot.slane %v28, 4
    %v1208 = vsel %vm106, %v1206, %v1207
    %v1209 = vrot.slane %v29, 4
    %v1210 = vsel %vm106, %v1207, %v1209
    %1211 = vrot.lane.b32.xlu0 %v1208, 124
    %v1212 = vpop.permute.xlu0 %1211
    %1213 = vrot.lane.b32.xlu0 %v1210, 124
    %v1214 = vpop.permute.xlu0 %1213
    %1215 = vrot.lane.b32.xlu0 %v1209, 124
    %v1216 = vpop.permute.xlu0 %1215
    %v1217 = vsel %vm96, %v1212, 0
    %v1219 = vsel %vm96, %v1214, 0
    %v1221 = vsel %vm96, %v1216, 0
    %v1224 = vsel %vm106, %v1203, 0
    %1226 = vmatprep.subr.mxu0 0.0
    %1227 = vmatpush1.msra.mxu0 0.0
    %1228 = vmatprep.subr.mxu0 0.0
    %1229 = vmatpush1.msra.mxu0 0.0
    %1230 = vmatprep.subr.mxu0 0.0
    %1231 = vmatpush1.msra.mxu0 0.0
    %1232 = vmatprep.subr.mxu0 0.0
    %1233 = vmatpush1.msra.mxu0 0.0
    %1234 = vmatprep.subr.mxu0 0.0
    %1235 = vmatpush1.msra.mxu0 0.0
    %1236 = vmatprep.subr.mxu0 0.0
    %1237 = vmatpush1.msra.mxu0 0.0
    %1238 = vmatprep.subr.mxu0 0.0
    %1239 = vmatpush1.msra.mxu0 0.0
    %1240 = vmatprep.subr.mxu0 0.0
    %1241 = vmatpush1.msra.mxu0 0.0
    %1242 = vmatprep.subr.mxu0 0.0
    %1243 = vmatpush1.msra.mxu0 0.0
    %1244 = vmatprep.subr.mxu0 0.0
    %1245 = vmatpush1.msra.mxu0 0.0
    %1246 = vmatprep.subr.mxu0 0.0
    %1247 = vmatpush1.msra.mxu0 0.0
    %1248 = vmatprep.subr.mxu0 0.0
    %1249 = vmatpush1.msra.mxu0 0.0
    %1250 = vmatprep.subr.mxu0 0.0
    %1251 = vmatpush1.msra.mxu0 0.0
    %1252 = vmatprep.subr.mxu0 0.0
    %1253 = vmatpush1.msra.mxu0 0.0
    %1254 = vmatprep.subr.mxu0 0.0
    %1255 = vmatpush1.msra.mxu0 0.0
    %1256 = vmatprep.subr.mxu0 0.0
    %1257 = vmatpush1.msra.mxu0 %v1224
    %1258 = vmatprep.subr.mxu0 0.0
    %1259 = vmatpush2.msra.mxu0 0.0
    %1260 = vmatprep.subr.mxu0 0.0
    %1261 = vmatpush2.msra.mxu0 0.0
    %1262 = vmatprep.subr.mxu0 0.0
    %1263 = vmatpush2.msra.mxu0 0.0
    %1264 = vmatprep.subr.mxu0 0.0
    %1265 = vmatpush2.msra.mxu0 0.0
    %1266 = vmatprep.subr.mxu0 0.0
    %1267 = vmatpush2.msra.mxu0 0.0
    %1268 = vmatprep.subr.mxu0 0.0
    %1269 = vmatpush2.msra.mxu0 0.0
    %1270 = vmatprep.subr.mxu0 0.0
    %1271 = vmatpush2.msra.mxu0 0.0
    %1272 = vmatprep.subr.mxu0 0.0
    %1273 = vmatpush2.msra.mxu0 0.0
    %1274 = vmatprep.subr.mxu0 0.0
    %1275 = vmatpush2.msra.mxu0 0.0
    %1276 = vmatprep.subr.mxu0 0.0
    %1277 = vmatpush2.msra.mxu0 0.0
    %1278 = vmatprep.subr.mxu0 0.0
    %1279 = vmatpush2.msra.mxu0 0.0
    %1280 = vmatprep.subr.mxu0 0.0
    %1281 = vmatpush2.msra.mxu0 0.0
    %1282 = vmatprep.subr.mxu0 0.0
    %1283 = vmatpush2.msra.mxu0 0.0
    %1284 = vmatprep.subr.mxu0 0.0
    %1285 = vmatpush2.msra.mxu0 0.0
    %1286 = vmatprep.subr.mxu0 0.0
    %1287 = vmatpush2.msra.mxu0 0.0
    %1288 = vmatprep.subr.mxu0 0.0
    %1289 = vmatpush2.msra.mxu0 0.0
    %1290 = vmatprep.mubr.f32.mxu0 0.0
    %1291 = vmatmul.mubr.f32.gmra.mxu0 %v1217
    %v1292 = vpop.f32.mrf.mxu0
    %v1293 = vadd.f32 0.0, %v1292
    %v1294 = vpop.f32.mrf.mxu0
    %1295 = vmatprep.mubr.f32.mxu0 0.0
    %1296 = vmatmul.mubr.f32.gmra.mxu0 %v1219
    %v1297 = vpop.f32.mrf.mxu0
    %v1298 = vadd.f32 0.0, %v1297
    %v1299 = vpop.f32.mrf.mxu0
    %1300 = vmatprep.mubr.f32.mxu0 0.0
    %1301 = vmatmul.mubr.f32.gmra.mxu0 %v1221
    %v1302 = vpop.f32.mrf.mxu0
    %v1303 = vadd.f32 0.0, %v1302
    %v1304 = vpop.f32.mrf.mxu0
    %1305 = vdwg.mxu0
    %v1306 = vsel %vm96, %v1208, 0
    %v1308 = vsel %vm96, %v1210, 0
    %v1310 = vsel %vm96, %v1209, 0
    %v1313 = vsel %vm106, %v1158, 0
    %1315 = vmatprep.subr.mxu0 0.0
    %1316 = vmatpush1.msra.mxu0 0.0
    %1317 = vmatprep.subr.mxu0 0.0
    %1318 = vmatpush1.msra.mxu0 0.0
    %1319 = vmatprep.subr.mxu0 0.0
    %1320 = vmatpush1.msra.mxu0 0.0
    %1321 = vmatprep.subr.mxu0 0.0
    %1322 = vmatpush1.msra.mxu0 0.0
    %1323 = vmatprep.subr.mxu0 0.0
    %1324 = vmatpush1.msra.mxu0 0.0
    %1325 = vmatprep.subr.mxu0 0.0
    %1326 = vmatpush1.msra.mxu0 0.0
    %1327 = vmatprep.subr.mxu0 0.0
    %1328 = vmatpush1.msra.mxu0 0.0
    %1329 = vmatprep.subr.mxu0 0.0
    %1330 = vmatpush1.msra.mxu0 0.0
    %1331 = vmatprep.subr.mxu0 0.0
    %1332 = vmatpush1.msra.mxu0 0.0
    %1333 = vmatprep.subr.mxu0 0.0
    %1334 = vmatpush1.msra.mxu0 0.0
    %1335 = vmatprep.subr.mxu0 0.0
    %1336 = vmatpush1.msra.mxu0 0.0
    %1337 = vmatprep.subr.mxu0 0.0
    %1338 = vmatpush1.msra.mxu0 0.0
    %1339 = vmatprep.subr.mxu0 0.0
    %1340 = vmatpush1.msra.mxu0 0.0
    %1341 = vmatprep.subr.mxu0 0.0
    %1342 = vmatpush1.msra.mxu0 0.0
    %1343 = vmatprep.subr.mxu0 0.0
    %1344 = vmatpush1.msra.mxu0 0.0
    %1345 = vmatprep.subr.mxu0 0.0
    %1346 = vmatpush1.msra.mxu0 %v1313
    %1347 = vmatprep.subr.mxu0 0.0
    %1348 = vmatpush2.msra.mxu0 0.0
    %1349 = vmatprep.subr.mxu0 0.0
    %1350 = vmatpush2.msra.mxu0 0.0
    %1351 = vmatprep.subr.mxu0 0.0
    %1352 = vmatpush2.msra.mxu0 0.0
    %1353 = vmatprep.subr.mxu0 0.0
    %1354 = vmatpush2.msra.mxu0 0.0
    %1355 = vmatprep.subr.mxu0 0.0
    %1356 = vmatpush2.msra.mxu0 0.0
    %1357 = vmatprep.subr.mxu0 0.0
    %1358 = vmatpush2.msra.mxu0 0.0
    %1359 = vmatprep.subr.mxu0 0.0
    %1360 = vmatpush2.msra.mxu0 0.0
    %1361 = vmatprep.subr.mxu0 0.0
    %1362 = vmatpush2.msra.mxu0 0.0
    %1363 = vmatprep.subr.mxu0 0.0
    %1364 = vmatpush2.msra.mxu0 0.0
    %1365 = vmatprep.subr.mxu0 0.0
    %1366 = vmatpush2.msra.mxu0 0.0
    %1367 = vmatprep.subr.mxu0 0.0
    %1368 = vmatpush2.msra.mxu0 0.0
    %1369 = vmatprep.subr.mxu0 0.0
    %1370 = vmatpush2.msra.mxu0 0.0
    %1371 = vmatprep.subr.mxu0 0.0
    %1372 = vmatpush2.msra.mxu0 0.0
    %1373 = vmatprep.subr.mxu0 0.0
    %1374 = vmatpush2.msra.mxu0 0.0
    %1375 = vmatprep.subr.mxu0 0.0
    %1376 = vmatpush2.msra.mxu0 0.0
    %1377 = vmatprep.subr.mxu0 0.0
    %1378 = vmatpush2.msra.mxu0 0.0
    %1379 = vmatprep.mubr.f32.mxu0 0.0
    %1380 = vmatmul.mubr.f32.gmra.mxu0 %v1306
    %v1381 = vpop.f32.mrf.mxu0
    %v1382 = vadd.f32 %v1293, %v1381
    %v1383 = vpop.f32.mrf.mxu0
    %1384 = vmatprep.mubr.f32.mxu0 0.0
    %1385 = vmatmul.mubr.f32.gmra.mxu0 %v1308
    %v1386 = vpop.f32.mrf.mxu0
    %v1387 = vadd.f32 %v1298, %v1386
    %v1388 = vpop.f32.mrf.mxu0
    %1389 = vmatprep.mubr.f32.mxu0 0.0
    %1390 = vmatmul.mubr.f32.gmra.mxu0 %v1310
    %v1391 = vpop.f32.mrf.mxu0
    %v1392 = vadd.f32 %v1303, %v1391
    %v1393 = vpop.f32.mrf.mxu0
    %1394 = vdwg.mxu0
    %1395 = vset.pattern.permute.xlu0 18
    %1396 = vperm.xlu0 %1395, %v909
    %v1397 = vpop.permute.xlu0 %1396
    %v1399 = vmul.f32 %v623, %v1397
    %1400 = vset.pattern.permute.xlu0 19
    %1401 = vperm.xlu0 %1400, %v921
    %v1402 = vpop.permute.xlu0 %1401
    %v1404 = vadd.f32 %v1399, %v1402
    %v1405 = vmax.f32 %v1404, 0.0
    %v1406 = vsel %vm32, %v1405, 0.0
    %1407 = vadd.xlane.f32.xlu0 %v1406
    %v1408 = vpop.xlane.xlu0 %1407
    %v1409 = vmul.f32 %v1408, 0.03125
    %v1410 = vsub.f32 %v1405, %v1409
    %v1411 = vmul.f32 %v1410, %v1410
    %v1412 = vsel %vm32, %v1411, 0.0
    %1413 = vadd.xlane.f32.xlu0 %v1412
    %v1414 = vpop.xlane.xlu0 %1413
    %v1415 = vmul.f32 %v1414, 0.03125
    %v1416 = vmul.f32 %v19, %v1415
    %v1417 = vadd.f32 %v1416, 1e-05
    %v1418 = vrsqrt.pop %v1417
    %1420 = vrot.lane.b32.xlu0 %v1418, 127
    %v1421 = vpop.permute.xlu0 %1420
    %v1423 = vmul.f32 %v19, %v1421
    %1425 = vset.pattern.permute.xlu0 20
    %1426 = vperm.xlu0 %1425, %v1423
    %v1427 = vpop.permute.xlu0 %1426
    %v1429 = vmul.f32 %v1410, %v1427
    %1430 = vset.pattern.permute.xlu0 22
    %1431 = vperm.xlu0 %1430, %v19
    %v1432 = vpop.permute.xlu0 %1431
    %v1434 = vadd.f32 %v1429, %v1432
    %v1435 = vmax.f32 %v1434, 0.0
    %1436 = vrot.lane.b32.xlu0 %v1208, 120
    %v1437 = vpop.permute.xlu0 %1436
    %1438 = vrot.lane.b32.xlu0 %v1210, 120
    %v1439 = vpop.permute.xlu0 %1438
    %1440 = vrot.lane.b32.xlu0 %v1209, 120
    %v1441 = vpop.permute.xlu0 %1440
    %v1442 = vsel %vm96, %v1437, 0
    %v1444 = vsel %vm96, %v1439, 0
    %v1446 = vsel %vm96, %v1441, 0
    %v1449 = vsel %vm106, %v1435, 0
    %1451 = vmatprep.subr.mxu0 0.0
    %1452 = vmatpush1.msra.mxu0 0.0
    %1453 = vmatprep.subr.mxu0 0.0
    %1454 = vmatpush1.msra.mxu0 0.0
    %1455 = vmatprep.subr.mxu0 0.0
    %1456 = vmatpush1.msra.mxu0 0.0
    %1457 = vmatprep.subr.mxu0 0.0
    %1458 = vmatpush1.msra.mxu0 0.0
    %1459 = vmatprep.subr.mxu0 0.0
    %1460 = vmatpush1.msra.mxu0 0.0
    %1461 = vmatprep.subr.mxu0 0.0
    %1462 = vmatpush1.msra.mxu0 0.0
    %1463 = vmatprep.subr.mxu0 0.0
    %1464 = vmatpush1.msra.mxu0 0.0
    %1465 = vmatprep.subr.mxu0 0.0
    %1466 = vmatpush1.msra.mxu0 0.0
    %1467 = vmatprep.subr.mxu0 0.0
    %1468 = vmatpush1.msra.mxu0 0.0
    %1469 = vmatprep.subr.mxu0 0.0
    %1470 = vmatpush1.msra.mxu0 0.0
    %1471 = vmatprep.subr.mxu0 0.0
    %1472 = vmatpush1.msra.mxu0 0.0
    %1473 = vmatprep.subr.mxu0 0.0
    %1474 = vmatpush1.msra.mxu0 0.0
    %1475 = vmatprep.subr.mxu0 0.0
    %1476 = vmatpush1.msra.mxu0 0.0
    %1477 = vmatprep.subr.mxu0 0.0
    %1478 = vmatpush1.msra.mxu0 0.0
    %1479 = vmatprep.subr.mxu0 0.0
    %1480 = vmatpush1.msra.mxu0 0.0
    %1481 = vmatprep.subr.mxu0 0.0
    %1482 = vmatpush1.msra.mxu0 %v1449
    %1483 = vmatprep.subr.mxu0 0.0
    %1484 = vmatpush2.msra.mxu0 0.0
    %1485 = vmatprep.subr.mxu0 0.0
    %1486 = vmatpush2.msra.mxu0 0.0
    %1487 = vmatprep.subr.mxu0 0.0
    %1488 = vmatpush2.msra.mxu0 0.0
    %1489 = vmatprep.subr.mxu0 0.0
    %1490 = vmatpush2.msra.mxu0 0.0
    %1491 = vmatprep.subr.mxu0 0.0
    %1492 = vmatpush2.msra.mxu0 0.0
    %1493 = vmatprep.subr.mxu0 0.0
    %1494 = vmatpush2.msra.mxu0 0.0
    %1495 = vmatprep.subr.mxu0 0.0
    %1496 = vmatpush2.msra.mxu0 0.0
    %1497 = vmatprep.subr.mxu0 0.0
    %1498 = vmatpush2.msra.mxu0 0.0
    %1499 = vmatprep.subr.mxu0 0.0
    %1500 = vmatpush2.msra.mxu0 0.0
    %1501 = vmatprep.subr.mxu0 0.0
    %1502 = vmatpush2.msra.mxu0 0.0
    %1503 = vmatprep.subr.mxu0 0.0
    %1504 = vmatpush2.msra.mxu0 0.0
    %1505 = vmatprep.subr.mxu0 0.0
    %1506 = vmatpush2.msra.mxu0 0.0
    %1507 = vmatprep.subr.mxu0 0.0
    %1508 = vmatpush2.msra.mxu0 0.0
    %1509 = vmatprep.subr.mxu0 0.0
    %1510 = vmatpush2.msra.mxu0 0.0
    %1511 = vmatprep.subr.mxu0 0.0
    %1512 = vmatpush2.msra.mxu0 0.0
    %1513 = vmatprep.subr.mxu0 0.0
    %1514 = vmatpush2.msra.mxu0 0.0
    %1515 = vmatprep.mubr.f32.mxu0 0.0
    %1516 = vmatmul.mubr.f32.gmra.mxu0 %v1442
    %v1517 = vpop.f32.mrf.mxu0
    %v1518 = vadd.f32 0.0, %v1517
    %v1519 = vpop.f32.mrf.mxu0
    %1520 = vmatprep.mubr.f32.mxu0 0.0
    %1521 = vmatmul.mubr.f32.gmra.mxu0 %v1444
    %v1522 = vpop.f32.mrf.mxu0
    %v1523 = vadd.f32 0.0, %v1522
    %v1524 = vpop.f32.mrf.mxu0
    %1525 = vmatprep.mubr.f32.mxu0 0.0
    %1526 = vmatmul.mubr.f32.gmra.mxu0 %v1446
    %v1527 = vpop.f32.mrf.mxu0
    %v1528 = vadd.f32 0.0, %v1527
    %v1529 = vpop.f32.mrf.mxu0
    %1530 = vdwg.mxu0
    %v1531 = vadd.f32 %v1382, %v1518
    %v1532 = vadd.f32 %v1387, %v1523
    %v1533 = vadd.f32 %v1392, %v1528
    %v1534 = vadd.f32 %v1117, 1e-05
    %v1535 = vrsqrt.pop %v1534
    %v1537 = vrot.slane %v1535, 4
    %v1539 = vmul.f32 %v19, %v1537
    %1541 = vset.pattern.permute.xlu0 18
    %1542 = vperm.xlu0 %1541, %v1539
    %v1543 = vpop.permute.xlu0 %1542
    %v1544 = vrot.slane %v1543, 4
    %v1546 = vmul.f32 %v1107, %v1544
    %v1548 = vrot.slane %v1111, 4
    %v1550 = vmul.f32 %v1539, %v1548
    %1552 = vrot.lane.b32.xlu0 %v1550, 1
    %v1553 = vpop.permute.xlu0 %1552
    %v1555 = vsub.f32 %v19, %v1553
    %1557 = vset.pattern.permute.xlu0 19
    %1558 = vperm.xlu0 %1557, %v1555
    %v1559 = vpop.permute.xlu0 %1558
    %v1560 = vrot.slane %v1559, 4
    %v1562 = vadd.f32 %v1546, %v1560
    %v1563 = vmax.f32 %v1562, 0.0
    %v1564 = vsel %vm32, %v1563, 0.0
    %1565 = vadd.xlane.f32.xlu0 %v1564
    %v1566 = vpop.xlane.xlu0 %1565
    %v1567 = vmul.f32 %v1566, 0.03125
    %v1568 = vsub.f32 %v1563, %v1567
    %v1569 = vmul.f32 %v1568, %v1568
    %v1570 = vsel %vm32, %v1569, 0.0
    %1571 = vadd.xlane.f32.xlu0 %v1570
    %v1572 = vpop.xlane.xlu0 %1571
    %v1573 = vmul.f32 %v1572, 0.03125
    %v1575 = vrot.slane %v1573, 4
    %v1577 = vmul.f32 %v19, %v1575
    %v1578 = vadd.f32 %v1577, 1e-05
    %v1579 = vrsqrt.pop %v1578
    %1581 = vrot.lane.b32.xlu0 %v1579, 127
    %v1582 = vpop.permute.xlu0 %1581
    %v1584 = vmul.f32 %v19, %v1582
    %1586 = vset.pattern.permute.xlu0 20
    %1587 = vperm.xlu0 %1586, %v1584
    %v1588 = vpop.permute.xlu0 %1587
    %v1589 = vrot.slane %v1588, 4
    %v1591 = vmul.f32 %v1568, %v1589
    %v1592 = vrot.slane %v1432, 4
    %v1594 = vadd.f32 %v1591, %v1592
    %v1595 = vmax.f32 %v1594, 0.0
    %1596 = vrot.lane.b32.xlu0 %v1208, 116
    %v1597 = vpop.permute.xlu0 %1596
    %1598 = vrot.lane.b32.xlu0 %v1210, 116
    %v1599 = vpop.permute.xlu0 %1598
    %1600 = vrot.lane.b32.xlu0 %v1209, 116
    %v1601 = vpop.permute.xlu0 %1600
    %v1602 = vsel %vm96, %v1597, 0
    %v1604 = vsel %vm96, %v1599, 0
    %v1606 = vsel %vm96, %v1601, 0
    %v1609 = vsel %vm106, %v1595, 0
    %1611 = vmatprep.subr.mxu0 0.0
    %1612 = vmatpush1.msra.mxu0 0.0
    %1613 = vmatprep.subr.mxu0 0.0
    %1614 = vmatpush1.msra.mxu0 0.0
    %1615 = vmatprep.subr.mxu0 0.0
    %1616 = vmatpush1.msra.mxu0 0.0
    %1617 = vmatprep.subr.mxu0 0.0
    %1618 = vmatpush1.msra.mxu0 0.0
    %1619 = vmatprep.subr.mxu0 0.0
    %1620 = vmatpush1.msra.mxu0 0.0
    %1621 = vmatprep.subr.mxu0 0.0
    %1622 = vmatpush1.msra.mxu0 0.0
    %1623 = vmatprep.subr.mxu0 0.0
    %1624 = vmatpush1.msra.mxu0 0.0
    %1625 = vmatprep.subr.mxu0 0.0
    %1626 = vmatpush1.msra.mxu0 0.0
    %1627 = vmatprep.subr.mxu0 0.0
    %1628 = vmatpush1.msra.mxu0 0.0
    %1629 = vmatprep.subr.mxu0 0.0
    %1630 = vmatpush1.msra.mxu0 0.0
    %1631 = vmatprep.subr.mxu0 0.0
    %1632 = vmatpush1.msra.mxu0 0.0
    %1633 = vmatprep.subr.mxu0 0.0
    %1634 = vmatpush1.msra.mxu0 0.0
    %1635 = vmatprep.subr.mxu0 0.0
    %1636 = vmatpush1.msra.mxu0 0.0
    %1637 = vmatprep.subr.mxu0 0.0
    %1638 = vmatpush1.msra.mxu0 0.0
    %1639 = vmatprep.subr.mxu0 0.0
    %1640 = vmatpush1.msra.mxu0 0.0
    %1641 = vmatprep.subr.mxu0 0.0
    %1642 = vmatpush1.msra.mxu0 %v1609
    %1643 = vmatprep.subr.mxu0 0.0
    %1644 = vmatpush2.msra.mxu0 0.0
    %1645 = vmatprep.subr.mxu0 0.0
    %1646 = vmatpush2.msra.mxu0 0.0
    %1647 = vmatprep.subr.mxu0 0.0
    %1648 = vmatpush2.msra.mxu0 0.0
    %1649 = vmatprep.subr.mxu0 0.0
    %1650 = vmatpush2.msra.mxu0 0.0
    %1651 = vmatprep.subr.mxu0 0.0
    %1652 = vmatpush2.msra.mxu0 0.0
    %1653 = vmatprep.subr.mxu0 0.0
    %1654 = vmatpush2.msra.mxu0 0.0
    %1655 = vmatprep.subr.mxu0 0.0
    %1656 = vmatpush2.msra.mxu0 0.0
    %1657 = vmatprep.subr.mxu0 0.0
    %1658 = vmatpush2.msra.mxu0 0.0
    %1659 = vmatprep.subr.mxu0 0.0
    %1660 = vmatpush2.msra.mxu0 0.0
    %1661 = vmatprep.subr.mxu0 0.0
    %1662 = vmatpush2.msra.mxu0 0.0
    %1663 = vmatprep.subr.mxu0 0.0
    %1664 = vmatpush2.msra.mxu0 0.0
    %1665 = vmatprep.subr.mxu0 0.0
    %1666 = vmatpush2.msra.mxu0 0.0
    %1667 = vmatprep.subr.mxu0 0.0
    %1668 = vmatpush2.msra.mxu0 0.0
    %1669 = vmatprep.subr.mxu0 0.0
    %1670 = vmatpush2.msra.mxu0 0.0
    %1671 = vmatprep.subr.mxu0 0.0
    %1672 = vmatpush2.msra.mxu0 0.0
    %1673 = vmatprep.subr.mxu0 0.0
    %1674 = vmatpush2.msra.mxu0 0.0
    %1675 = vmatprep.mubr.f32.mxu0 0.0
    %1676 = vmatmul.mubr.f32.gmra.mxu0 %v1602
    %v1677 = vpop.f32.mrf.mxu0
    %v1678 = vadd.f32 0.0, %v1677
    %v1679 = vpop.f32.mrf.mxu0
    %1680 = vmatprep.mubr.f32.mxu0 0.0
    %1681 = vmatmul.mubr.f32.gmra.mxu0 %v1604
    %v1682 = vpop.f32.mrf.mxu0
    %v1683 = vadd.f32 0.0, %v1682
    %v1684 = vpop.f32.mrf.mxu0
    %1685 = vmatprep.mubr.f32.mxu0 0.0
    %1686 = vmatmul.mubr.f32.gmra.mxu0 %v1606
    %v1687 = vpop.f32.mrf.mxu0
    %v1688 = vadd.f32 0.0, %v1687
    %v1689 = vpop.f32.mrf.mxu0
    %1690 = vdwg.mxu0
    %v1691 = vadd.f32 %v1531, %v1678
    %v1692 = vadd.f32 %v1532, %v1683
    %v1693 = vadd.f32 %v1533, %v1688
    %1697 = vrot.lane.b32.xlu0 %v1691, 2
    %v1698 = vpop.permute.xlu0 %1697
    %1699 = vrot.lane.b32.xlu0 %v1692, 2
    %v1700 = vpop.permute.xlu0 %1699
    %1701 = vrot.lane.b32.xlu0 %v1693, 2
    %v1702 = vpop.permute.xlu0 %1701
    %v1706 = vsel %vm202, 0.0, %v1698
    %v1707 = vsel %vm202, 0.0, %v1700
    %v1708 = vsel %vm202, 0.0, %v1702
    %v1709 = vsel %vm206, %v1706, 0.0
    %v1710 = vsel %vm206, %v1707, 0.0
    %v1711 = vsel %vm206, %v1708, 0.0
    %v1712 = vmul.f32 %v1709, %v213
    %v1713 = vadd.f32 %v1712, 0.0
    %v1714 = vmul.f32 %v1709, %v222
    %v1716 = vrot.slane %v1714, 4
    %1717 = vrot.lane.b32.xlu0 %v1716, 127
    %v1718 = vpop.permute.xlu0 %1717
    %v1720 = vadd.f32 %v1713, %v1718
    %1722 = vrot.lane.b32.xlu0 %v1710, 126
    %v1723 = vpop.permute.xlu0 %1722
    %v1725 = vadd.f32 %v1720, %v1723
    %v1726 = vmul.f32 %v1710, %v242
    %v1728 = vrot.slane %v1726, 4
    %1729 = vrot.lane.b32.xlu0 %v1728, 125
    %v1730 = vpop.permute.xlu0 %1729
    %v1732 = vadd.f32 %v1725, %v1730
    %v1733 = vmul.f32 %v1711, %v257
    %1735 = vrot.lane.b32.xlu0 %v1733, 124
    %v1736 = vpop.permute.xlu0 %1735
    %v1738 = vadd.f32 %v1732, %v1736
    %1739 = vset.pattern.permute.xlu0 23
    %1740 = vperm.xlu0 %1739, %v18
    %v1741 = vpop.permute.xlu0 %1740
    %v1743 = vadd.f32 %v1738, %v1741
    %1744 = vst.msk [vmem:[#allocation2] sm:$0xf] %vm32, %v1743
    // Predicated region
    $region18: #{tpu_custom_call.1} parent=1 // pred_check
      _
    $region19: #{tpu_custom_call.1} parent=1 // pred_check_branch
      %1746 = sbr.rel (0) target = $region21
    $region20: #{tpu_custom_call.1} parent=1 // pred_region
      %s1748 = ssub.s32 64, 64
      %1749 = vsyncadd [#allocation3], %s1748
      %s1751 = sshll.u32 [#allocation2], 4
      %s1752 = int_to_ptr.vmem [resolvable:$true] %s1751
      %1754 = dma.vmem_to_hbm [thread:$0]  %s1752, 64, %s4, [#allocation3]
    $region21: #{tpu_custom_call.1} parent=1 // pred_fallthru
      _
    // Predicated region
    $region22: #{tpu_custom_call.1} parent=1 // pred_check
      _
    $region23: #{tpu_custom_call.1} parent=1 // pred_check_branch
      %1756 = sbr.rel (0) target = $region25
    $region24: #{tpu_custom_call.1} parent=1 // pred_region
      %1757 = dma.done [#allocation3], 64
    $region25: #{tpu_custom_call.1} parent=1 // pred_fallthru
      _
    %1758 = vsyncpa [#allocation3], 1

</llo_original>
